<compile_context>
chip_gen: v7x
topology: tpu7x:2x2x1
jax: 0.10.0
libtpu: 0.0.40
codegen_flags: <defaults>
</compile_context>

<pallas_src>
import numpy as np
import jax
import jax.numpy as jnp
from jax import lax
from jax.experimental import pallas as pl
from jax.experimental.pallas import tpu as pltpu

EPS = 1e-6
SQRT_HALF = 0.7071067811865476


def _gelu_exact(v):
    # exact (erf) GELU -- used by the pure-JAX reference (torch.nn.GELU default)
    return 0.5 * v * (1.0 + lax.erf(v * SQRT_HALF))


def _gelu_tanh(v):
    # tanh-approximate GELU inside the kernel: the transcendental lands on the
    # EUP slot instead of a long erf polynomial on the vector ALU.
    return jax.nn.gelu(v, approximate=True)


def _layernorm_lastdim(v, w, b):
    # channels_first LayerNorm from the PyTorch module (biased variance),
    # applied over the last (channel) axis of the NHWC-flattened tensor.
    # rsqrt on the tiny (M,1) stats (EUP) + broadcast multiply, no full divide.
    u = jnp.mean(v, axis=-1, keepdims=True)
    c = v - u
    s = jnp.mean(c * c, axis=-1, keepdims=True)
    return (c * lax.rsqrt(s + EPS)) * w + b


def scblock_kernel(x_ref, w9_ref, bdw_ref, ln1w_ref, ln1b_ref,
                   sew1_ref, seb1_ref, sew2_ref, seb2_ref,
                   pww_ref, pwb_ref, ln2w_ref, ln2b_ref, gamma_ref,
                   out_ref, xpad_scr, patch_scr):
    B, H, W, C = out_ref.shape
    HW = H * W
    M = B * HW
    f32 = jnp.float32
    bf16 = jnp.bfloat16

    # --- zero padding in VMEM: halo-only zeroing; interior overwritten below -
    xpad_scr[:, 0:1, :, :] = jnp.zeros((B, 1, W + 2, C), f32)
    xpad_scr[:, H + 1:H + 2, :, :] = jnp.zeros((B, 1, W + 2, C), f32)
    xpad_scr[:, 1:H + 1, 0:1, :] = jnp.zeros((B, H, 1, C), f32)
    xpad_scr[:, 1:H + 1, W + 1:W + 2, :] = jnp.zeros((B, H, 1, C), f32)
    xpad_scr[:, 1:H + 1, 1:W + 1, :] = x_ref[...]

    # --- im2col: each shifted 3x3 window written straight into its bf16 tap
    #     slab of the (B, H, W, 9C) scratch (no reshape/concat copy passes) ---
    for t in range(9):
        kh, kw = t // 3, t % 3
        patch_scr[:, :, :, t * C:(t + 1) * C] = (
            xpad_scr[:, kh:kh + H, kw:kw + W, :].astype(bf16))
    patch9 = patch_scr[...].reshape(M, 9 * C)     # leading-dim collapse only

    x_center = x_ref[...].reshape(M, C)           # f32 rows for the residual

    # --- grouped 3x3 conv as ONE K=9C MXU matmul (bf16 operands, f32 acc) ----
    # TODO(synk): w9 is block-diagonal densified (groups-x structural-zero
    # FLOPs); for production dim (groups >= 4) split into per-group matmuls.
    acc = jnp.dot(patch9, w9_ref[...], preferred_element_type=f32) + bdw_ref[...]

    # --- LayerNorm over channels + GELU (f32) --------------------------------
    y = _gelu_tanh(_layernorm_lastdim(acc, ln1w_ref[...], ln1b_ref[...]))

    # --- Squeeze-and-Excitation (batched over the whole block) ---------------
    y3 = y.reshape(B, HW, C)
    pooled = jnp.sum(y3, axis=1) * jnp.float32(1.0 / HW)        # (B, C) XLU reduce
    h = jnp.dot(pooled.astype(bf16), sew1_ref[...],
                preferred_element_type=f32) + seb1_ref[...]
    h = jnp.maximum(h, 0.0)                                      # ReLU
    gate = jax.nn.sigmoid(
        jnp.dot(h.astype(bf16), sew2_ref[...],
                preferred_element_type=f32) + seb2_ref[...])     # (B, C)
    y = (y3 * gate[:, None, :]).reshape(M, C)                    # broadcast gate

    # --- 1x1 conv -> LayerNorm -> GELU ---------------------------------------
    z = jnp.dot(y.astype(bf16), pww_ref[...],
                preferred_element_type=f32) + pwb_ref[...]
    z = _gelu_tanh(_layernorm_lastdim(z, ln2w_ref[...], ln2b_ref[...]))

    # --- layer scale (gamma) + residual (all f32) -----------------------------
    out = x_center + gamma_ref[...] * z
    # TODO(synk): C=64 (<128 lanes) forces masked output stores; keep dim a
    # multiple of 128 in the surrounding model (or present a lane-dense
    # (N, H, W*C) output slab) to lift the lane-occupancy ceiling.
    out_ref[...] = out.reshape(B, H, W, C).astype(out_ref.dtype)


def _pick_batch_block(n, hw, target_rows=1024):
    """Largest divisor of n with B_blk*H*W <= target_rows, capped so the grid
    keeps >= 2 steps (lets the parallel batch axis shard across v7x's 2 TCs)."""
    bmax = max(1, target_rows // hw)
    if n >= 2:
        bmax = min(bmax, n // 2)
    best = 1
    for d in range(1, n + 1):
        if n % d == 0 and d <= bmax:
            best = d
    return best


def _vmem_limit_bytes(b_blk, h, w, c):
    """Rough live-set estimate with 2x headroom, clamped to [32 MiB, 64 MiB]
    (64 MiB = v7x per-core physical VMEM)."""
    f32, bf16 = 4, 2
    m = b_blk * h * w
    est = (b_blk * (h + 2) * (w + 2) * c * f32      # padded-input scratch
           + m * 9 * c * bf16                        # bf16 im2col scratch
           + 2 * 2 * m * c * f32                     # double-buffered in/out blocks
           + 4 * m * c * f32                         # live f32 (M, C) intermediates
           + 2 * (9 * c * c + 3 * c * c) * bf16      # double-buffered bf16 weights
           + 2 * 16 * c * f32)                       # biases / LN / gamma vectors
    return int(min(64 * 1024 * 1024, max(32 * 1024 * 1024, 2 * est)))


def scblock_forward(x_nchw, p):
    """x_nchw: (N, C, H, W) float32. p: dict of kernel-layout parameters."""
    N, C, H, W = x_nchw.shape
    x = jnp.transpose(x_nchw, (0, 2, 3, 1))          # NHWC: C on the lane axis
    B_blk = _pick_batch_block(N, H * W)              # batch-blocked grid
    grid = (N // B_blk,)

    vec_spec = lambda: pl.BlockSpec((1, C), lambda b: (0, 0))
    mat_spec = lambda: pl.BlockSpec((C, C), lambda b: (0, 0))

    out_nhwc = pl.pallas_call(
        scblock_kernel,
        out_shape=jax.ShapeDtypeStruct((N, H, W, C), x_nchw.dtype),
        grid_spec=pltpu.PrefetchScalarGridSpec(
            num_scalar_prefetch=0,
            grid=grid,
            in_specs=[
                pl.BlockSpec((B_blk, H, W, C), lambda b: (b, 0, 0, 0)),  # x (NHWC)
                pl.BlockSpec((9 * C, C), lambda b: (0, 0)),              # fused dw taps (bf16)
                vec_spec(),                                              # dw bias
                vec_spec(), vec_spec(),                                  # ln1 w, b
                mat_spec(), vec_spec(),                                  # se fc1 w (bf16), b
                mat_spec(), vec_spec(),                                  # se fc2 w (bf16), b
                mat_spec(), vec_spec(),                                  # 1x1 conv w (bf16), b
                vec_spec(), vec_spec(),                                  # ln2 w, b
                vec_spec(),                                              # gamma
            ],
            out_specs=pl.BlockSpec((B_blk, H, W, C), lambda b: (b, 0, 0, 0)),
            scratch_shapes=[
                pltpu.VMEM((B_blk, H + 2, W + 2, C), jnp.float32),       # padded input
                pltpu.VMEM((B_blk, H, W, 9 * C), jnp.bfloat16),          # bf16 im2col
            ],
        ),
        compiler_params=pltpu.CompilerParams(
            dimension_semantics=("parallel",),
            vmem_limit_bytes=_vmem_limit_bytes(B_blk, H, W, C)),
    )(x, p["w_dw9"], p["b_dw"], p["ln1_w"], p["ln1_b"],
      p["se_w1"], p["se_b1"], p["se_w2"], p["se_b2"],
      p["pw_w"], p["pw_b"], p["ln2_w"], p["ln2_b"], p["gamma"])

    return jnp.transpose(out_nhwc, (0, 3, 1, 2))     # back to NCHW


# ----------------------------- parameter setup ------------------------------

def init_raw_params(key, dim, groups):
    """Deterministic params in PyTorch conventions (OIHW / (out,in) weights)."""
    cig = dim // groups
    ks = jax.random.split(key, 12)
    s = 0.02
    raw = dict(
        w_dw=jax.random.normal(ks[0], (dim, cig, 3, 3), jnp.float32) * s,   # grouped OIHW
        b_dw=jax.random.normal(ks[1], (dim,), jnp.float32) * s,
        se_w1=jax.random.normal(ks[2], (dim, dim), jnp.float32) * s,        # (out, in)
        se_b1=jax.random.normal(ks[3], (dim,), jnp.float32) * s,
        se_w2=jax.random.normal(ks[4], (dim, dim), jnp.float32) * s,
        se_b2=jax.random.normal(ks[5], (dim,), jnp.float32) * s,
        pw_w=jax.random.normal(ks[6], (dim, dim), jnp.float32) * s,         # (out, in)
        pw_b=jax.random.normal(ks[7], (dim,), jnp.float32) * s,
        # LayerNorm params (PyTorch inits ones/zeros; perturb so the check is meaningful)
        ln1_w=1.0 + 0.1 * jax.random.normal(ks[8], (dim,), jnp.float32),
        ln1_b=0.1 * jax.random.normal(ks[9], (dim,), jnp.float32),
        ln2_w=1.0 + 0.1 * jax.random.normal(ks[10], (dim,), jnp.float32),
        ln2_b=0.1 * jax.random.normal(ks[11], (dim,), jnp.float32),
        # layer scale (module inits to 1e-6 * ones; use O(0.1) so the branch
        # visibly contributes — forward semantics unchanged)
        gamma=0.1 * jnp.ones((dim,), jnp.float32),
    )
    return raw


def pack_kernel_params(raw, dim, groups):
    """Convert PyTorch-convention params to the kernel's NHWC-matmul layout."""
    cig = dim // groups
    w_dw = np.asarray(raw["w_dw"], np.float32)
    # densify grouped 3x3 conv weights into 9 block-diagonal (C_in, C_out) taps,
    # then stack along K into a single (9*C, C) matrix (tap-major: kh*3+kw).
    w_dense = np.zeros((9, dim, dim), np.float32)
    for gi in range(groups):
        blk = w_dw[gi * cig:(gi + 1) * cig]                              # (out_g, in_g, 3, 3)
        blk = np.transpose(blk, (2, 3, 1, 0)).reshape(9, cig, cig)       # (tap, in, out)
        w_dense[:, gi * cig:(gi + 1) * cig, gi * cig:(gi + 1) * cig] = blk
    w9 = w_dense.reshape(9 * dim, dim)
    # TODO(synk): block-diagonal densification burns groups-x extra MXU FLOPs
    # on structural zeros; for large dim, per-group matmuls would avoid it.
    r = lambda v: jnp.asarray(v, jnp.float32).reshape(1, dim)
    bf = lambda v: jnp.asarray(v, jnp.bfloat16)
    return dict(
        w_dw9=bf(w9),
        b_dw=r(raw["b_dw"]),
        ln1_w=r(raw["ln1_w"]), ln1_b=r(raw["ln1_b"]),
        se_w1=bf(np.asarray(raw["se_w1"]).T), se_b1=r(raw["se_b1"]),     # (in, out) for x @ W
        se_w2=bf(np.asarray(raw["se_w2"]).T), se_b2=r(raw["se_b2"]),
        pw_w=bf(np.asarray(raw["pw_w"]).T), pw_b=r(raw["pw_b"]),
        ln2_w=r(raw["ln2_w"]), ln2_b=r(raw["ln2_b"]),
        gamma=r(raw["gamma"]),
    )


# --------------------------- pure-JAX reference ------------------------------

def _ln_channels_first(x, w, b):
    u = jnp.mean(x, axis=1, keepdims=True)
    s = jnp.mean((x - u) ** 2, axis=1, keepdims=True)
    xn = (x - u) / jnp.sqrt(s + EPS)
    return w[None, :, None, None] * xn + b[None, :, None, None]


def ref_forward(x, raw, groups):
    inp = x
    y = lax.conv_general_dilated(
        x, raw["w_dw"], (1, 1), ((1, 1), (1, 1)),
        dimension_numbers=("NCHW", "OIHW", "NCHW"),
        feature_group_count=groups) + raw["b_dw"][None, :, None, None]
    y = _gelu_exact(_ln_channels_first(y, raw["ln1_w"], raw["ln1_b"]))
    # SE
    p = jnp.mean(y, axis=(2, 3))                                   # (N, C)
    h = jax.nn.relu(p @ raw["se_w1"].T + raw["se_b1"])
    g = jax.nn.sigmoid(h @ raw["se_w2"].T + raw["se_b2"])
    y = y * g[:, :, None, None]
    # 1x1 conv
    z = jnp.einsum("nchw,oc->nohw", y, raw["pw_w"]) + raw["pw_b"][None, :, None, None]
    z = _gelu_exact(_ln_channels_first(z, raw["ln2_w"], raw["ln2_b"]))
    # TODO(synk): DropPath with drop_path=0.0 is an identity; stochastic depth not implemented.
    return inp + raw["gamma"][None, :, None, None] * z


if __name__ == "__main__":
    N, dim, H, W = 2, 64, 8, 8            # dim must be a multiple of 32 (groups = dim // 32)
    groups = dim // 32

    key = jax.random.PRNGKey(0)
    kx, kp = jax.random.split(key)
    x = jax.random.normal(kx, (N, dim, H, W), jnp.float32)

    raw = init_raw_params(kp, dim, groups)
    kparams = pack_kernel_params(raw, dim, groups)

    out = jax.block_until_ready(scblock_forward(x, kparams))
    ref = jax.block_until_ready(ref_forward(x, raw, groups))

    # bf16 MXU operands (f32 accumulation / elementwise) + tanh-approx GELU in
    # the kernel (reference keeps exact erf GELU) -> 1e-2 tolerance.
    np.testing.assert_allclose(np.asarray(out), np.asarray(ref), rtol=1e-2, atol=1e-2)
    print("KERNEL_OK")
</pallas_src>

<mosaic_0001>
module attributes {stable_mosaic.version = 11 : i64} {
  func.func @scblock_kernel(%arg0: i32, %arg1: memref<1x8x8x64xf32, #tpu.memory_space<vmem>>, %arg2: memref<576x64xbf16, #tpu.memory_space<vmem>>, %arg3: memref<1x64xf32, #tpu.memory_space<vmem>>, %arg4: memref<1x64xf32, #tpu.memory_space<vmem>>, %arg5: memref<1x64xf32, #tpu.memory_space<vmem>>, %arg6: memref<64x64xbf16, #tpu.memory_space<vmem>>, %arg7: memref<1x64xf32, #tpu.memory_space<vmem>>, %arg8: memref<64x64xbf16, #tpu.memory_space<vmem>>, %arg9: memref<1x64xf32, #tpu.memory_space<vmem>>, %arg10: memref<64x64xbf16, #tpu.memory_space<vmem>>, %arg11: memref<1x64xf32, #tpu.memory_space<vmem>>, %arg12: memref<1x64xf32, #tpu.memory_space<vmem>>, %arg13: memref<1x64xf32, #tpu.memory_space<vmem>>, %arg14: memref<1x64xf32, #tpu.memory_space<vmem>>, %arg15: memref<1x8x8x64xf32, #tpu.memory_space<vmem>>, %arg16: memref<1x10x10x64xf32, #tpu.memory_space<vmem>>, %arg17: memref<1x8x8x576xbf16, #tpu.memory_space<vmem>>) attributes {dimension_semantics = [#tpu.dimension_semantics<parallel>], iteration_bounds = array<i64: 2>, scalar_prefetch = 0 : i64, scratch_operands = 2 : i64, tpu.core_type = #tpu.core_type<tc>, window_params = [{transform_indices = @transform_0, window_bounds = array<i64: 1, 8, 8, 64>}, {pipeline_mode = #tpu.pipeline_mode<synchronous>, transform_indices = @transform_1, window_bounds = array<i64: 576, 64>}, {pipeline_mode = #tpu.pipeline_mode<synchronous>, transform_indices = @transform_2, window_bounds = array<i64: 1, 64>}, {pipeline_mode = #tpu.pipeline_mode<synchronous>, transform_indices = @transform_3, window_bounds = array<i64: 1, 64>}, {pipeline_mode = #tpu.pipeline_mode<synchronous>, transform_indices = @transform_4, window_bounds = array<i64: 1, 64>}, {pipeline_mode = #tpu.pipeline_mode<synchronous>, transform_indices = @transform_5, window_bounds = array<i64: 64, 64>}, {pipeline_mode = #tpu.pipeline_mode<synchronous>, transform_indices = @transform_6, window_bounds = array<i64: 1, 64>}, {pipeline_mode = #tpu.pipeline_mode<synchronous>, transform_indices = @transform_7, window_bounds = array<i64: 64, 64>}, {pipeline_mode = #tpu.pipeline_mode<synchronous>, transform_indices = @transform_8, window_bounds = array<i64: 1, 64>}, {pipeline_mode = #tpu.pipeline_mode<synchronous>, transform_indices = @transform_9, window_bounds = array<i64: 64, 64>}, {pipeline_mode = #tpu.pipeline_mode<synchronous>, transform_indices = @transform_10, window_bounds = array<i64: 1, 64>}, {pipeline_mode = #tpu.pipeline_mode<synchronous>, transform_indices = @transform_11, window_bounds = array<i64: 1, 64>}, {pipeline_mode = #tpu.pipeline_mode<synchronous>, transform_indices = @transform_12, window_bounds = array<i64: 1, 64>}, {pipeline_mode = #tpu.pipeline_mode<synchronous>, transform_indices = @transform_13, window_bounds = array<i64: 1, 64>}, {transform_indices = @transform_14, window_bounds = array<i64: 1, 8, 8, 64>}]} {
    %cst = arith.constant 0.000000e+00 : f32
    %0 = vector.broadcast %cst : f32 to vector<1x1x10x64xf32>
    %c0 = arith.constant 0 : index
    %c0_0 = arith.constant 0 : index
    %c0_1 = arith.constant 0 : index
    %c0_2 = arith.constant 0 : index
    %1 = vector.load %arg16[%c0, %c0_0, %c0_1, %c0_2] : memref<1x10x10x64xf32, #tpu.memory_space<vmem>>, vector<1x1x10x64xf32>
    tpu.vector_store %arg16[%c0, %c0_0, %c0_1, %c0_2], %0 {strides = array<i32>} : memref<1x10x10x64xf32, #tpu.memory_space<vmem>>, vector<1x1x10x64xf32>,
    %cst_3 = arith.constant 0.000000e+00 : f32
    %2 = vector.broadcast %cst_3 : f32 to vector<1x1x10x64xf32>
    %c0_4 = arith.constant 0 : index
    %c9 = arith.constant 9 : index
    %c0_5 = arith.constant 0 : index
    %c0_6 = arith.constant 0 : index
    %3 = vector.load %arg16[%c0_4, %c9, %c0_5, %c0_6] : memref<1x10x10x64xf32, #tpu.memory_space<vmem>>, vector<1x1x10x64xf32>
    tpu.vector_store %arg16[%c0_4, %c9, %c0_5, %c0_6], %2 {strides = array<i32>} : memref<1x10x10x64xf32, #tpu.memory_space<vmem>>, vector<1x1x10x64xf32>,
    %cst_7 = arith.constant 0.000000e+00 : f32
    %4 = vector.broadcast %cst_7 : f32 to vector<1x8x1x64xf32>
    %c0_8 = arith.constant 0 : index
    %c1 = arith.constant 1 : index
    %c0_9 = arith.constant 0 : index
    %c0_10 = arith.constant 0 : index
    %5 = vector.load %arg16[%c0_8, %c1, %c0_9, %c0_10] : memref<1x10x10x64xf32, #tpu.memory_space<vmem>>, vector<1x8x1x64xf32>
    tpu.vector_store %arg16[%c0_8, %c1, %c0_9, %c0_10], %4 {strides = array<i32>} : memref<1x10x10x64xf32, #tpu.memory_space<vmem>>, vector<1x8x1x64xf32>,
    %cst_11 = arith.constant 0.000000e+00 : f32
    %6 = vector.broadcast %cst_11 : f32 to vector<1x8x1x64xf32>
    %c0_12 = arith.constant 0 : index
    %c1_13 = arith.constant 1 : index
    %c9_14 = arith.constant 9 : index
    %c0_15 = arith.constant 0 : index
    %7 = vector.load %arg16[%c0_12, %c1_13, %c9_14, %c0_15] : memref<1x10x10x64xf32, #tpu.memory_space<vmem>>, vector<1x8x1x64xf32>
    tpu.vector_store %arg16[%c0_12, %c1_13, %c9_14, %c0_15], %6 {strides = array<i32>} : memref<1x10x10x64xf32, #tpu.memory_space<vmem>>, vector<1x8x1x64xf32>,
    %c0_16 = arith.constant 0 : index
    %c0_17 = arith.constant 0 : index
    %c0_18 = arith.constant 0 : index
    %c0_19 = arith.constant 0 : index
    %8 = vector.load %arg1[%c0_16, %c0_17, %c0_18, %c0_19] : memref<1x8x8x64xf32, #tpu.memory_space<vmem>>, vector<1x8x8x64xf32>
    %c0_20 = arith.constant 0 : index
    %c1_21 = arith.constant 1 : index
    %c1_22 = arith.constant 1 : index
    %c0_23 = arith.constant 0 : index
    %9 = vector.load %arg16[%c0_20, %c1_21, %c1_22, %c0_23] : memref<1x10x10x64xf32, #tpu.memory_space<vmem>>, vector<1x8x8x64xf32>
    tpu.vector_store %arg16[%c0_20, %c1_21, %c1_22, %c0_23], %8 {strides = array<i32>} : memref<1x10x10x64xf32, #tpu.memory_space<vmem>>, vector<1x8x8x64xf32>,
    %c0_24 = arith.constant 0 : index
    %c0_25 = arith.constant 0 : index
    %c0_26 = arith.constant 0 : index
    %c0_27 = arith.constant 0 : index
    %10 = vector.load %arg16[%c0_24, %c0_25, %c0_26, %c0_27] : memref<1x10x10x64xf32, #tpu.memory_space<vmem>>, vector<1x8x8x64xf32>
    %11 = arith.truncf %10 : vector<1x8x8x64xf32> to vector<1x8x8x64xbf16>
    %c0_28 = arith.constant 0 : index
    %c0_29 = arith.constant 0 : index
    %c0_30 = arith.constant 0 : index
    %c0_31 = arith.constant 0 : index
    %12 = vector.load %arg17[%c0_28, %c0_29, %c0_30, %c0_31] : memref<1x8x8x576xbf16, #tpu.memory_space<vmem>>, vector<1x8x8x64xbf16>
    tpu.vector_store %arg17[%c0_28, %c0_29, %c0_30, %c0_31], %11 {strides = array<i32>} : memref<1x8x8x576xbf16, #tpu.memory_space<vmem>>, vector<1x8x8x64xbf16>,
    %c0_32 = arith.constant 0 : index
    %c0_33 = arith.constant 0 : index
    %c1_34 = arith.constant 1 : index
    %c0_35 = arith.constant 0 : index
    %13 = vector.load %arg16[%c0_32, %c0_33, %c1_34, %c0_35] : memref<1x10x10x64xf32, #tpu.memory_space<vmem>>, vector<1x8x8x64xf32>
    %14 = arith.truncf %13 : vector<1x8x8x64xf32> to vector<1x8x8x64xbf16>
    %c0_36 = arith.constant 0 : index
    %c0_37 = arith.constant 0 : index
    %c0_38 = arith.constant 0 : index
    %c64 = arith.constant 64 : index
    %15 = vector.load %arg17[%c0_36, %c0_37, %c0_38, %c64] : memref<1x8x8x576xbf16, #tpu.memory_space<vmem>>, vector<1x8x8x64xbf16>
    tpu.vector_store %arg17[%c0_36, %c0_37, %c0_38, %c64], %14 {strides = array<i32>} : memref<1x8x8x576xbf16, #tpu.memory_space<vmem>>, vector<1x8x8x64xbf16>,
    %c0_39 = arith.constant 0 : index
    %c0_40 = arith.constant 0 : index
    %c2 = arith.constant 2 : index
    %c0_41 = arith.constant 0 : index
    %16 = vector.load %arg16[%c0_39, %c0_40, %c2, %c0_41] : memref<1x10x10x64xf32, #tpu.memory_space<vmem>>, vector<1x8x8x64xf32>
    %17 = arith.truncf %16 : vector<1x8x8x64xf32> to vector<1x8x8x64xbf16>
    %c0_42 = arith.constant 0 : index
    %c0_43 = arith.constant 0 : index
    %c0_44 = arith.constant 0 : index
    %c128 = arith.constant 128 : index
    %18 = vector.load %arg17[%c0_42, %c0_43, %c0_44, %c128] : memref<1x8x8x576xbf16, #tpu.memory_space<vmem>>, vector<1x8x8x64xbf16>
    tpu.vector_store %arg17[%c0_42, %c0_43, %c0_44, %c128], %17 {strides = array<i32>} : memref<1x8x8x576xbf16, #tpu.memory_space<vmem>>, vector<1x8x8x64xbf16>,
    %c0_45 = arith.constant 0 : index
    %c1_46 = arith.constant 1 : index
    %c0_47 = arith.constant 0 : index
    %c0_48 = arith.constant 0 : index
    %19 = vector.load %arg16[%c0_45, %c1_46, %c0_47, %c0_48] : memref<1x10x10x64xf32, #tpu.memory_space<vmem>>, vector<1x8x8x64xf32>
    %20 = arith.truncf %19 : vector<1x8x8x64xf32> to vector<1x8x8x64xbf16>
    %c0_49 = arith.constant 0 : index
    %c0_50 = arith.constant 0 : index
    %c0_51 = arith.constant 0 : index
    %c192 = arith.constant 192 : index
    %21 = vector.load %arg17[%c0_49, %c0_50, %c0_51, %c192] : memref<1x8x8x576xbf16, #tpu.memory_space<vmem>>, vector<1x8x8x64xbf16>
    tpu.vector_store %arg17[%c0_49, %c0_50, %c0_51, %c192], %20 {strides = array<i32>} : memref<1x8x8x576xbf16, #tpu.memory_space<vmem>>, vector<1x8x8x64xbf16>,
    %c0_52 = arith.constant 0 : index
    %c1_53 = arith.constant 1 : index
    %c1_54 = arith.constant 1 : index
    %c0_55 = arith.constant 0 : index
    %22 = vector.load %arg16[%c0_52, %c1_53, %c1_54, %c0_55] : memref<1x10x10x64xf32, #tpu.memory_space<vmem>>, vector<1x8x8x64xf32>
    %23 = arith.truncf %22 : vector<1x8x8x64xf32> to vector<1x8x8x64xbf16>
    %c0_56 = arith.constant 0 : index
    %c0_57 = arith.constant 0 : index
    %c0_58 = arith.constant 0 : index
    %c256 = arith.constant 256 : index
    %24 = vector.load %arg17[%c0_56, %c0_57, %c0_58, %c256] : memref<1x8x8x576xbf16, #tpu.memory_space<vmem>>, vector<1x8x8x64xbf16>
    tpu.vector_store %arg17[%c0_56, %c0_57, %c0_58, %c256], %23 {strides = array<i32>} : memref<1x8x8x576xbf16, #tpu.memory_space<vmem>>, vector<1x8x8x64xbf16>,
    %c0_59 = arith.constant 0 : index
    %c1_60 = arith.constant 1 : index
    %c2_61 = arith.constant 2 : index
    %c0_62 = arith.constant 0 : index
    %25 = vector.load %arg16[%c0_59, %c1_60, %c2_61, %c0_62] : memref<1x10x10x64xf32, #tpu.memory_space<vmem>>, vector<1x8x8x64xf32>
    %26 = arith.truncf %25 : vector<1x8x8x64xf32> to vector<1x8x8x64xbf16>
    %c0_63 = arith.constant 0 : index
    %c0_64 = arith.constant 0 : index
    %c0_65 = arith.constant 0 : index
    %c320 = arith.constant 320 : index
    %27 = vector.load %arg17[%c0_63, %c0_64, %c0_65, %c320] : memref<1x8x8x576xbf16, #tpu.memory_space<vmem>>, vector<1x8x8x64xbf16>
    tpu.vector_store %arg17[%c0_63, %c0_64, %c0_65, %c320], %26 {strides = array<i32>} : memref<1x8x8x576xbf16, #tpu.memory_space<vmem>>, vector<1x8x8x64xbf16>,
    %c0_66 = arith.constant 0 : index
    %c2_67 = arith.constant 2 : index
    %c0_68 = arith.constant 0 : index
    %c0_69 = arith.constant 0 : index
    %28 = vector.load %arg16[%c0_66, %c2_67, %c0_68, %c0_69] : memref<1x10x10x64xf32, #tpu.memory_space<vmem>>, vector<1x8x8x64xf32>
    %29 = arith.truncf %28 : vector<1x8x8x64xf32> to vector<1x8x8x64xbf16>
    %c0_70 = arith.constant 0 : index
    %c0_71 = arith.constant 0 : index
    %c0_72 = arith.constant 0 : index
    %c384 = arith.constant 384 : index
    %30 = vector.load %arg17[%c0_70, %c0_71, %c0_72, %c384] : memref<1x8x8x576xbf16, #tpu.memory_space<vmem>>, vector<1x8x8x64xbf16>
    tpu.vector_store %arg17[%c0_70, %c0_71, %c0_72, %c384], %29 {strides = array<i32>} : memref<1x8x8x576xbf16, #tpu.memory_space<vmem>>, vector<1x8x8x64xbf16>,
    %c0_73 = arith.constant 0 : index
    %c2_74 = arith.constant 2 : index
    %c1_75 = arith.constant 1 : index
    %c0_76 = arith.constant 0 : index
    %31 = vector.load %arg16[%c0_73, %c2_74, %c1_75, %c0_76] : memref<1x10x10x64xf32, #tpu.memory_space<vmem>>, vector<1x8x8x64xf32>
    %32 = arith.truncf %31 : vector<1x8x8x64xf32> to vector<1x8x8x64xbf16>
    %c0_77 = arith.constant 0 : index
    %c0_78 = arith.constant 0 : index
    %c0_79 = arith.constant 0 : index
    %c448 = arith.constant 448 : index
    %33 = vector.load %arg17[%c0_77, %c0_78, %c0_79, %c448] : memref<1x8x8x576xbf16, #tpu.memory_space<vmem>>, vector<1x8x8x64xbf16>
    tpu.vector_store %arg17[%c0_77, %c0_78, %c0_79, %c448], %32 {strides = array<i32>} : memref<1x8x8x576xbf16, #tpu.memory_space<vmem>>, vector<1x8x8x64xbf16>,
    %c0_80 = arith.constant 0 : index
    %c2_81 = arith.constant 2 : index
    %c2_82 = arith.constant 2 : index
    %c0_83 = arith.constant 0 : index
    %34 = vector.load %arg16[%c0_80, %c2_81, %c2_82, %c0_83] : memref<1x10x10x64xf32, #tpu.memory_space<vmem>>, vector<1x8x8x64xf32>
    %35 = arith.truncf %34 : vector<1x8x8x64xf32> to vector<1x8x8x64xbf16>
    %c0_84 = arith.constant 0 : index
    %c0_85 = arith.constant 0 : index
    %c0_86 = arith.constant 0 : index
    %c512 = arith.constant 512 : index
    %36 = vector.load %arg17[%c0_84, %c0_85, %c0_86, %c512] : memref<1x8x8x576xbf16, #tpu.memory_space<vmem>>, vector<1x8x8x64xbf16>
    tpu.vector_store %arg17[%c0_84, %c0_85, %c0_86, %c512], %35 {strides = array<i32>} : memref<1x8x8x576xbf16, #tpu.memory_space<vmem>>, vector<1x8x8x64xbf16>,
    %c0_87 = arith.constant 0 : index
    %c0_88 = arith.constant 0 : index
    %c0_89 = arith.constant 0 : index
    %c0_90 = arith.constant 0 : index
    %37 = vector.load %arg17[%c0_87, %c0_88, %c0_89, %c0_90] : memref<1x8x8x576xbf16, #tpu.memory_space<vmem>>, vector<1x8x8x576xbf16>
    %38 = vector.shape_cast %37 : vector<1x8x8x576xbf16> to vector<64x576xbf16>
    %c0_91 = arith.constant 0 : index
    %c0_92 = arith.constant 0 : index
    %c0_93 = arith.constant 0 : index
    %c0_94 = arith.constant 0 : index
    %39 = vector.load %arg1[%c0_91, %c0_92, %c0_93, %c0_94] : memref<1x8x8x64xf32, #tpu.memory_space<vmem>>, vector<1x8x8x64xf32>
    %40 = vector.shape_cast %39 : vector<1x8x8x64xf32> to vector<64x64xf32>
    %c0_95 = arith.constant 0 : index
    %c0_96 = arith.constant 0 : index
    %41 = vector.load %arg2[%c0_95, %c0_96] : memref<576x64xbf16, #tpu.memory_space<vmem>>, vector<576x64xbf16>
    %cst_97 = arith.constant dense<0.000000e+00> : vector<64x64xf32>
    %42 = tpu.matmul %38, %41, %cst_97 {dimension_numbers = #tpu.dot_dimension_numbers<[1], [0], [0], [1], [0, 0, 1, 1], [], []>} : vector<64x576xbf16>, vector<576x64xbf16>, vector<64x64xf32> -> vector<64x64xf32>
    %c0_98 = arith.constant 0 : index
    %c0_99 = arith.constant 0 : index
    %43 = vector.load %arg3[%c0_98, %c0_99] : memref<1x64xf32, #tpu.memory_space<vmem>>, vector<1x64xf32>
    %44 = vector.broadcast %43 : vector<1x64xf32> to vector<64x64xf32>
    %45 = arith.addf %42, %44 : vector<64x64xf32>
    %c0_100 = arith.constant 0 : index
    %c0_101 = arith.constant 0 : index
    %46 = vector.load %arg4[%c0_100, %c0_101] : memref<1x64xf32, #tpu.memory_space<vmem>>, vector<1x64xf32>
    %c0_102 = arith.constant 0 : index
    %c0_103 = arith.constant 0 : index
    %47 = vector.load %arg5[%c0_102, %c0_103] : memref<1x64xf32, #tpu.memory_space<vmem>>, vector<1x64xf32>
    %cst_104 = arith.constant dense<0.000000e+00> : vector<64xf32>
    %48 = vector.multi_reduction <add>, %45, %cst_104 [1] : vector<64x64xf32> to vector<64xf32>
    %49 = vector.shape_cast %48 : vector<64xf32> to vector<64x1xf32>
    %cst_105 = arith.constant 6.400000e+01 : f32
    %50 = vector.broadcast %cst_105 : f32 to vector<64x1xf32>
    %51 = arith.divf %49, %50 : vector<64x1xf32>
    %52 = vector.broadcast %51 : vector<64x1xf32> to vector<64x64xf32>
    %53 = arith.subf %45, %52 : vector<64x64xf32>
    %54 = arith.mulf %53, %53 : vector<64x64xf32>
    %cst_106 = arith.constant dense<0.000000e+00> : vector<64xf32>
    %55 = vector.multi_reduction <add>, %54, %cst_106 [1] : vector<64x64xf32> to vector<64xf32>
    %56 = vector.shape_cast %55 : vector<64xf32> to vector<64x1xf32>
    %cst_107 = arith.constant 6.400000e+01 : f32
    %57 = vector.broadcast %cst_107 : f32 to vector<64x1xf32>
    %58 = arith.divf %56, %57 : vector<64x1xf32>
    %cst_108 = arith.constant 9.99999997E-7 : f32
    %59 = vector.broadcast %cst_108 : f32 to vector<64x1xf32>
    %60 = arith.addf %58, %59 : vector<64x1xf32>
    %61 = math.rsqrt %60 : vector<64x1xf32>
    %62 = vector.broadcast %61 : vector<64x1xf32> to vector<64x64xf32>
    %63 = arith.mulf %53, %62 : vector<64x64xf32>
    %64 = vector.broadcast %46 : vector<1x64xf32> to vector<64x64xf32>
    %65 = arith.mulf %63, %64 : vector<64x64xf32>
    %66 = vector.broadcast %47 : vector<1x64xf32> to vector<64x64xf32>
    %67 = arith.addf %65, %66 : vector<64x64xf32>
    %68 = arith.mulf %67, %67 : vector<64x64xf32>
    %69 = arith.mulf %67, %68 : vector<64x64xf32>
    %cst_109 = arith.constant 4.471500e-02 : f32
    %70 = vector.broadcast %cst_109 : f32 to vector<64x64xf32>
    %71 = arith.mulf %70, %69 : vector<64x64xf32>
    %72 = arith.addf %67, %71 : vector<64x64xf32>
    %cst_110 = arith.constant 0.797884583 : f32
    %73 = vector.broadcast %cst_110 : f32 to vector<64x64xf32>
    %74 = arith.mulf %73, %72 : vector<64x64xf32>
    %75 = math.tanh %74 : vector<64x64xf32>
    %cst_111 = arith.constant 1.000000e+00 : f32
    %76 = vector.broadcast %cst_111 : f32 to vector<64x64xf32>
    %77 = arith.addf %76, %75 : vector<64x64xf32>
    %cst_112 = arith.constant 5.000000e-01 : f32
    %78 = vector.broadcast %cst_112 : f32 to vector<64x64xf32>
    %79 = arith.mulf %78, %77 : vector<64x64xf32>
    %80 = arith.mulf %67, %79 : vector<64x64xf32>
    %81 = vector.shape_cast %80 : vector<64x64xf32> to vector<1x64x64xf32>
    %cst_113 = arith.constant dense<0.000000e+00> : vector<1x64xf32>
    %82 = vector.multi_reduction <add>, %81, %cst_113 [1] : vector<1x64x64xf32> to vector<1x64xf32>
    %cst_114 = arith.constant 1.562500e-02 : f32
    %83 = vector.broadcast %cst_114 : f32 to vector<1x64xf32>
    %84 = arith.mulf %82, %83 : vector<1x64xf32>
    %85 = arith.truncf %84 : vector<1x64xf32> to vector<1x64xbf16>
    %c0_115 = arith.constant 0 : index
    %c0_116 = arith.constant 0 : index
    %86 = vector.load %arg6[%c0_115, %c0_116] : memref<64x64xbf16, #tpu.memory_space<vmem>>, vector<64x64xbf16>
    %cst_117 = arith.constant dense<0.000000e+00> : vector<1x64xf32>
    %87 = tpu.matmul %85, %86, %cst_117 {dimension_numbers = #tpu.dot_dimension_numbers<[1], [0], [0], [1], [0, 0, 1, 1], [], []>} : vector<1x64xbf16>, vector<64x64xbf16>, vector<1x64xf32> -> vector<1x64xf32>
    %c0_118 = arith.constant 0 : index
    %c0_119 = arith.constant 0 : index
    %88 = vector.load %arg7[%c0_118, %c0_119] : memref<1x64xf32, #tpu.memory_space<vmem>>, vector<1x64xf32>
    %89 = arith.addf %87, %88 : vector<1x64xf32>
    %cst_120 = arith.constant 0.000000e+00 : f32
    %90 = vector.broadcast %cst_120 : f32 to vector<1x64xf32>
    %91 = arith.maximumf %89, %90 : vector<1x64xf32>
    %92 = arith.truncf %91 : vector<1x64xf32> to vector<1x64xbf16>
    %c0_121 = arith.constant 0 : index
    %c0_122 = arith.constant 0 : index
    %93 = vector.load %arg8[%c0_121, %c0_122] : memref<64x64xbf16, #tpu.memory_space<vmem>>, vector<64x64xbf16>
    %cst_123 = arith.constant dense<0.000000e+00> : vector<1x64xf32>
    %94 = tpu.matmul %92, %93, %cst_123 {dimension_numbers = #tpu.dot_dimension_numbers<[1], [0], [0], [1], [0, 0, 1, 1], [], []>} : vector<1x64xbf16>, vector<64x64xbf16>, vector<1x64xf32> -> vector<1x64xf32>
    %c0_124 = arith.constant 0 : index
    %c0_125 = arith.constant 0 : index
    %95 = vector.load %arg9[%c0_124, %c0_125] : memref<1x64xf32, #tpu.memory_space<vmem>>, vector<1x64xf32>
    %96 = arith.addf %94, %95 : vector<1x64xf32>
    %97 = arith.negf %96 : vector<1x64xf32>
    %98 = math.exp %97 : vector<1x64xf32>
    %cst_126 = arith.constant 1.000000e+00 : f32
    %99 = vector.broadcast %cst_126 : f32 to vector<1x64xf32>
    %100 = arith.addf %99, %98 : vector<1x64xf32>
    %101 = arith.divf %99, %100 : vector<1x64xf32>
    %102 = vector.shape_cast %101 : vector<1x64xf32> to vector<1x1x64xf32>
    %103 = vector.broadcast %102 : vector<1x1x64xf32> to vector<1x64x64xf32>
    %104 = arith.mulf %81, %103 : vector<1x64x64xf32>
    %105 = vector.shape_cast %104 : vector<1x64x64xf32> to vector<64x64xf32>
    %106 = arith.truncf %105 : vector<64x64xf32> to vector<64x64xbf16>
    %c0_127 = arith.constant 0 : index
    %c0_128 = arith.constant 0 : index
    %107 = vector.load %arg10[%c0_127, %c0_128] : memref<64x64xbf16, #tpu.memory_space<vmem>>, vector<64x64xbf16>
    %cst_129 = arith.constant dense<0.000000e+00> : vector<64x64xf32>
    %108 = tpu.matmul %106, %107, %cst_129 {dimension_numbers = #tpu.dot_dimension_numbers<[1], [0], [0], [1], [0, 0, 1, 1], [], []>} : vector<64x64xbf16>, vector<64x64xbf16>, vector<64x64xf32> -> vector<64x64xf32>
    %c0_130 = arith.constant 0 : index
    %c0_131 = arith.constant 0 : index
    %109 = vector.load %arg11[%c0_130, %c0_131] : memref<1x64xf32, #tpu.memory_space<vmem>>, vector<1x64xf32>
    %110 = vector.broadcast %109 : vector<1x64xf32> to vector<64x64xf32>
    %111 = arith.addf %108, %110 : vector<64x64xf32>
    %c0_132 = arith.constant 0 : index
    %c0_133 = arith.constant 0 : index
    %112 = vector.load %arg12[%c0_132, %c0_133] : memref<1x64xf32, #tpu.memory_space<vmem>>, vector<1x64xf32>
    %c0_134 = arith.constant 0 : index
    %c0_135 = arith.constant 0 : index
    %113 = vector.load %arg13[%c0_134, %c0_135] : memref<1x64xf32, #tpu.memory_space<vmem>>, vector<1x64xf32>
    %cst_136 = arith.constant dense<0.000000e+00> : vector<64xf32>
    %114 = vector.multi_reduction <add>, %111, %cst_136 [1] : vector<64x64xf32> to vector<64xf32>
    %115 = vector.shape_cast %114 : vector<64xf32> to vector<64x1xf32>
    %cst_137 = arith.constant 6.400000e+01 : f32
    %116 = vector.broadcast %cst_137 : f32 to vector<64x1xf32>
    %117 = arith.divf %115, %116 : vector<64x1xf32>
    %118 = vector.broadcast %117 : vector<64x1xf32> to vector<64x64xf32>
    %119 = arith.subf %111, %118 : vector<64x64xf32>
    %120 = arith.mulf %119, %119 : vector<64x64xf32>
    %cst_138 = arith.constant dense<0.000000e+00> : vector<64xf32>
    %121 = vector.multi_reduction <add>, %120, %cst_138 [1] : vector<64x64xf32> to vector<64xf32>
    %122 = vector.shape_cast %121 : vector<64xf32> to vector<64x1xf32>
    %cst_139 = arith.constant 6.400000e+01 : f32
    %123 = vector.broadcast %cst_139 : f32 to vector<64x1xf32>
    %124 = arith.divf %122, %123 : vector<64x1xf32>
    %cst_140 = arith.constant 9.99999997E-7 : f32
    %125 = vector.broadcast %cst_140 : f32 to vector<64x1xf32>
    %126 = arith.addf %124, %125 : vector<64x1xf32>
    %127 = math.rsqrt %126 : vector<64x1xf32>
    %128 = vector.broadcast %127 : vector<64x1xf32> to vector<64x64xf32>
    %129 = arith.mulf %119, %128 : vector<64x64xf32>
    %130 = vector.broadcast %112 : vector<1x64xf32> to vector<64x64xf32>
    %131 = arith.mulf %129, %130 : vector<64x64xf32>
    %132 = vector.broadcast %113 : vector<1x64xf32> to vector<64x64xf32>
    %133 = arith.addf %131, %132 : vector<64x64xf32>
    %134 = arith.mulf %133, %133 : vector<64x64xf32>
    %135 = arith.mulf %133, %134 : vector<64x64xf32>
    %cst_141 = arith.constant 4.471500e-02 : f32
    %136 = vector.broadcast %cst_141 : f32 to vector<64x64xf32>
    %137 = arith.mulf %136, %135 : vector<64x64xf32>
    %138 = arith.addf %133, %137 : vector<64x64xf32>
    %cst_142 = arith.constant 0.797884583 : f32
    %139 = vector.broadcast %cst_142 : f32 to vector<64x64xf32>
    %140 = arith.mulf %139, %138 : vector<64x64xf32>
    %141 = math.tanh %140 : vector<64x64xf32>
    %cst_143 = arith.constant 1.000000e+00 : f32
    %142 = vector.broadcast %cst_143 : f32 to vector<64x64xf32>
    %143 = arith.addf %142, %141 : vector<64x64xf32>
    %cst_144 = arith.constant 5.000000e-01 : f32
    %144 = vector.broadcast %cst_144 : f32 to vector<64x64xf32>
    %145 = arith.mulf %144, %143 : vector<64x64xf32>
    %146 = arith.mulf %133, %145 : vector<64x64xf32>
    %c0_145 = arith.constant 0 : index
    %c0_146 = arith.constant 0 : index
    %147 = vector.load %arg14[%c0_145, %c0_146] : memref<1x64xf32, #tpu.memory_space<vmem>>, vector<1x64xf32>
    %148 = vector.broadcast %147 : vector<1x64xf32> to vector<64x64xf32>
    %149 = arith.mulf %148, %146 : vector<64x64xf32>
    %150 = arith.addf %40, %149 : vector<64x64xf32>
    %151 = vector.shape_cast %150 : vector<64x64xf32> to vector<1x8x8x64xf32>
    %c0_147 = arith.constant 0 : index
    %c0_148 = arith.constant 0 : index
    %c0_149 = arith.constant 0 : index
    %c0_150 = arith.constant 0 : index
    %152 = vector.load %arg15[%c0_147, %c0_148, %c0_149, %c0_150] : memref<1x8x8x64xf32, #tpu.memory_space<vmem>>, vector<1x8x8x64xf32>
    tpu.vector_store %arg15[%c0_147, %c0_148, %c0_149, %c0_150], %151 {strides = array<i32>} : memref<1x8x8x64xf32, #tpu.memory_space<vmem>>, vector<1x8x8x64xf32>,
    return
  }
  func.func @transform_0(%arg0: i32) -> (i32, i32, i32, i32) {
    %c0_i32 = arith.constant 0 : i32
    %c0_i32_0 = arith.constant 0 : i32
    %c0_i32_1 = arith.constant 0 : i32
    %c0_i32_2 = arith.constant 0 : i32
    return %arg0, %c0_i32, %c0_i32_0, %c0_i32_1 : i32, i32, i32, i32
  }
  func.func @transform_1(%arg0: i32) -> (i32, i32) {
    %c0_i32 = arith.constant 0 : i32
    %c0_i32_0 = arith.constant 0 : i32
    %c0_i32_1 = arith.constant 0 : i32
    return %c0_i32, %c0_i32_0 : i32, i32
  }
  func.func @transform_2(%arg0: i32) -> (i32, i32) {
    %c0_i32 = arith.constant 0 : i32
    %c0_i32_0 = arith.constant 0 : i32
    %c0_i32_1 = arith.constant 0 : i32
    return %c0_i32, %c0_i32_0 : i32, i32
  }
  func.func @transform_3(%arg0: i32) -> (i32, i32) {
    %c0_i32 = arith.constant 0 : i32
    %c0_i32_0 = arith.constant 0 : i32
    %c0_i32_1 = arith.constant 0 : i32
    return %c0_i32, %c0_i32_0 : i32, i32
  }
  func.func @transform_4(%arg0: i32) -> (i32, i32) {
    %c0_i32 = arith.constant 0 : i32
    %c0_i32_0 = arith.constant 0 : i32
    %c0_i32_1 = arith.constant 0 : i32
    return %c0_i32, %c0_i32_0 : i32, i32
  }
  func.func @transform_5(%arg0: i32) -> (i32, i32) {
    %c0_i32 = arith.constant 0 : i32
    %c0_i32_0 = arith.constant 0 : i32
    %c0_i32_1 = arith.constant 0 : i32
    return %c0_i32, %c0_i32_0 : i32, i32
  }
  func.func @transform_6(%arg0: i32) -> (i32, i32) {
    %c0_i32 = arith.constant 0 : i32
    %c0_i32_0 = arith.constant 0 : i32
    %c0_i32_1 = arith.constant 0 : i32
    return %c0_i32, %c0_i32_0 : i32, i32
  }
  func.func @transform_7(%arg0: i32) -> (i32, i32) {
    %c0_i32 = arith.constant 0 : i32
    %c0_i32_0 = arith.constant 0 : i32
    %c0_i32_1 = arith.constant 0 : i32
    return %c0_i32, %c0_i32_0 : i32, i32
  }
  func.func @transform_8(%arg0: i32) -> (i32, i32) {
    %c0_i32 = arith.constant 0 : i32
    %c0_i32_0 = arith.constant 0 : i32
    %c0_i32_1 = arith.constant 0 : i32
    return %c0_i32, %c0_i32_0 : i32, i32
  }
  func.func @transform_9(%arg0: i32) -> (i32, i32) {
    %c0_i32 = arith.constant 0 : i32
    %c0_i32_0 = arith.constant 0 : i32
    %c0_i32_1 = arith.constant 0 : i32
    return %c0_i32, %c0_i32_0 : i32, i32
  }
  func.func @transform_10(%arg0: i32) -> (i32, i32) {
    %c0_i32 = arith.constant 0 : i32
    %c0_i32_0 = arith.constant 0 : i32
    %c0_i32_1 = arith.constant 0 : i32
    return %c0_i32, %c0_i32_0 : i32, i32
  }
  func.func @transform_11(%arg0: i32) -> (i32, i32) {
    %c0_i32 = arith.constant 0 : i32
    %c0_i32_0 = arith.constant 0 : i32
    %c0_i32_1 = arith.constant 0 : i32
    return %c0_i32, %c0_i32_0 : i32, i32
  }
  func.func @transform_12(%arg0: i32) -> (i32, i32) {
    %c0_i32 = arith.constant 0 : i32
    %c0_i32_0 = arith.constant 0 : i32
    %c0_i32_1 = arith.constant 0 : i32
    return %c0_i32, %c0_i32_0 : i32, i32
  }
  func.func @transform_13(%arg0: i32) -> (i32, i32) {
    %c0_i32 = arith.constant 0 : i32
    %c0_i32_0 = arith.constant 0 : i32
    %c0_i32_1 = arith.constant 0 : i32
    return %c0_i32, %c0_i32_0 : i32, i32
  }
  func.func @transform_14(%arg0: i32) -> (i32, i32, i32, i32) {
    %c0_i32 = arith.constant 0 : i32
    %c0_i32_0 = arith.constant 0 : i32
    %c0_i32_1 = arith.constant 0 : i32
    %c0_i32_2 = arith.constant 0 : i32
    return %arg0, %c0_i32, %c0_i32_0, %c0_i32_1 : i32, i32, i32, i32
  }
}

</mosaic_0001>

<llo_original>
// kernel: tpu_custom_call.1
$region0: #{tpu_custom_call.1}
  #allocation0 [shape = 'u32[]', space=smem, size = 0x4, offset = 0x4, fixed_abs, tag = 'smem constant byte address 0x4 - core index']
  #allocation1 [shape = 'u32[144,128]{1,0:T(1,128)}', space=vmem, size = 0x12000, scoped, tag = 'internal scratch']
  #allocation2 [shape = 'f32[1,10,10,64]{3,2,1,0:T(8,128)}', space=vmem, size = 0x14000, scoped, tag = 'scratch operand']
  #allocation3 [shape = 'bf16[1,8,8,576]{3,2,1,0:T(8,128)(2,1)}', space=vmem, size = 0x14000, scoped, tag = 'scratch operand']
  %s0 = inlined_call_operand.vmem [shape: f32[2,8,8,64], index: 0, kind: input, shape index: {}]
  %s1 = inlined_call_operand.vmem [shape: bf16[576,64], index: 1, kind: input, shape index: {}]
  %s2 = inlined_call_operand.vmem [shape: f32[1,64], index: 2, kind: input, shape index: {}]
  %s3 = inlined_call_operand.vmem [shape: f32[1,64], index: 3, kind: input, shape index: {}]
  %s4 = inlined_call_operand.vmem [shape: f32[1,64], index: 4, kind: input, shape index: {}]
  %s5 = inlined_call_operand.vmem [shape: bf16[64,64], index: 5, kind: input, shape index: {}]
  %s6 = inlined_call_operand.vmem [shape: f32[1,64], index: 6, kind: input, shape index: {}]
  %s7 = inlined_call_operand.vmem [shape: bf16[64,64], index: 7, kind: input, shape index: {}]
  %s8 = inlined_call_operand.vmem [shape: f32[1,64], index: 8, kind: input, shape index: {}]
  %s9 = inlined_call_operand.vmem [shape: bf16[64,64], index: 9, kind: input, shape index: {}]
  %s10 = inlined_call_operand.vmem [shape: f32[1,64], index: 10, kind: input, shape index: {}]
  %s11 = inlined_call_operand.vmem [shape: f32[1,64], index: 11, kind: input, shape index: {}]
  %s12 = inlined_call_operand.vmem [shape: f32[1,64], index: 12, kind: input, shape index: {}]
  %s13 = inlined_call_operand.vmem [shape: f32[1,64], index: 13, kind: input, shape index: {}]
  %s14 = inlined_call_operand.hbm [shape: f32[2,8,8,64], index: 14, kind: output, shape index: {}]
  %s15 = sld [smem:[#allocation0]]
  $region89: #{tpu_custom_call.1} parent=0
    _
  %s17 = ssub.s32 1, %s15
  %s18 = scalar_select 0, %s17, %s15
  $region1: #{tpu_custom_call.1} parent=0
    #allocation4 [shape = 'u8[65536]{0}', space=vmem, size = 0x10000, scoped, tag = 'output window, operand 0']
    #allocation5 [shape = 's32[2]{0}', space=sflag, size = 0x8, scoped, tag = 'scoped memory for tpu_custom_call.1']
    %19 = vsyncpa [#allocation5], 0
    %s20 = scalar_lea.sflag [#allocation5], 1
    %21 = vsyncpa %s20, 0
    loop: start=0, step=1, limit=4
    $region2: #{tpu_custom_call.1} parent=1 // loop_pre_header
      _
    $region3: #{tpu_custom_call.1} parent=1 // loop_header
      %s23 = sphi 0, %s27
      %p24 = scmp.ge.s32.totalorder %s23, 4
      %s33 = sphi 0, %s35
      %s36 = sphi 0, %s33
      %s37 = sphi 0, %s36
      %s53 = sphi 0, %s37
      %s57 = sphi 0, %s57
      %s59 = sphi 0, %s57
      %s60 = sphi 0, %s59
      %s74 = sphi 0, %s60
      %s78 = sphi 0, %s78
      %s80 = sphi 0, %s78
      %s81 = sphi 0, %s80
      %s95 = sphi 0, %s81
      %s99 = sphi 0, %s99
      %s101 = sphi 0, %s99
      %s102 = sphi 0, %s101
      %s116 = sphi 0, %s102
      %s120 = sphi 0, %s120
      %s122 = sphi 0, %s120
      %s123 = sphi 0, %s122
      %s137 = sphi 0, %s123
      %s141 = sphi 0, %s141
      %s143 = sphi 0, %s141
      %s144 = sphi 0, %s143
      %s158 = sphi 0, %s144
      %s162 = sphi 0, %s162
      %s164 = sphi 0, %s162
      %s165 = sphi 0, %s164
      %s179 = sphi 0, %s165
      %s183 = sphi 0, %s183
      %s185 = sphi 0, %s183
      %s186 = sphi 0, %s185
      %s200 = sphi 0, %s186
      %s204 = sphi 0, %s204
      %s206 = sphi 0, %s204
      %s207 = sphi 0, %s206
      %s221 = sphi 0, %s207
      %s225 = sphi 0, %s225
      %s227 = sphi 0, %s225
      %s228 = sphi 0, %s227
      %s242 = sphi 0, %s228
      %s246 = sphi 0, %s246
      %s248 = sphi 0, %s246
      %s249 = sphi 0, %s248
      %s263 = sphi 0, %s249
      %s267 = sphi 0, %s267
      %s269 = sphi 0, %s267
      %s270 = sphi 0, %s269
      %s284 = sphi 0, %s270
      %s288 = sphi 0, %s288
      %s290 = sphi 0, %s288
      %s291 = sphi 0, %s290
      %s305 = sphi 0, %s291
      %s309 = sphi 0, %s309
      %s311 = sphi 0, %s309
      %s312 = sphi 0, %s311
      %s326 = sphi 0, %s312
      %s332 = sphi 0, %s334
      %s335 = sphi 0, %s332
      %s336 = sphi 0, %s335
      %s352 = sphi 0, %s336
    $region4: #{tpu_custom_call.1} parent=1 // loop_header_branch
      %26 = sbr.rel (%p24) target = $region8
    $region5: #{tpu_custom_call.1} parent=1 // loop_body
      %s28 = ssub.s32 %s23, 1
      %s29 = ssub.s32 %s23, 2
      %s30 = sadd.s32 %s23, 1
      %s31 = ssub.s32 %s23, %s30
      %p32 = scmp.eq.s32.totalorder %s31, 0
      %s34 = sadd.s32 %s33, 1
      %s35 = scalar_select %p32, %s33, %s34
      %p38 = pneg %p32
      %p39 = scmp.eq.s32.totalorder %s23, 1
      %p40 = por %p38, %p39
      %p41 = scmp.ne.s32.totalorder %s33, %s36
      %p42 = scmp.eq.s32.totalorder %s23, 0
      %p43 = por %p41, %p42
      %p44 = scmp.ne.s32.totalorder %s33, %s36
      %p45 = scmp.eq.s32.totalorder %s28, 1
      %p46 = por %p44, %p45
      %p47 = scmp.ne.s32.totalorder %s36, %s37
      %p48 = scmp.eq.s32.totalorder %s28, 0
      %p49 = por %p47, %p48
      %p50 = scmp.ne.s32.totalorder %s36, %s37
      %p51 = scmp.eq.s32.totalorder %s29, 1
      %p52 = por %p50, %p51
      %p54 = scmp.ne.s32.totalorder %s37, %s53
      %p55 = scmp.eq.s32.totalorder %s29, 0
      %p56 = por %p54, %p55
      %s58 = sadd.s32 %s57, 1
      %p61 = scmp.eq.s32.totalorder %s23, 1
      %p62 = scmp.ne.s32.totalorder %s57, %s59
      %p63 = scmp.eq.s32.totalorder %s23, 0
      %p64 = por %p62, %p63
      %p65 = scmp.ne.s32.totalorder %s57, %s59
      %p66 = scmp.eq.s32.totalorder %s28, 1
      %p67 = por %p65, %p66
      %p68 = scmp.ne.s32.totalorder %s59, %s60
      %p69 = scmp.eq.s32.totalorder %s28, 0
      %p70 = por %p68, %p69
      %p71 = scmp.ne.s32.totalorder %s59, %s60
      %p72 = scmp.eq.s32.totalorder %s29, 1
      %p73 = por %p71, %p72
      %p75 = scmp.ne.s32.totalorder %s60, %s74
      %p76 = scmp.eq.s32.totalorder %s29, 0
      %p77 = por %p75, %p76
      %s79 = sadd.s32 %s78, 1
      %p82 = scmp.eq.s32.totalorder %s23, 1
      %p83 = scmp.ne.s32.totalorder %s78, %s80
      %p84 = scmp.eq.s32.totalorder %s23, 0
      %p85 = por %p83, %p84
      %p86 = scmp.ne.s32.totalorder %s78, %s80
      %p87 = scmp.eq.s32.totalorder %s28, 1
      %p88 = por %p86, %p87
      %p89 = scmp.ne.s32.totalorder %s80, %s81
      %p90 = scmp.eq.s32.totalorder %s28, 0
      %p91 = por %p89, %p90
      %p92 = scmp.ne.s32.totalorder %s80, %s81
      %p93 = scmp.eq.s32.totalorder %s29, 1
      %p94 = por %p92, %p93
      %p96 = scmp.ne.s32.totalorder %s81, %s95
      %p97 = scmp.eq.s32.totalorder %s29, 0
      %p98 = por %p96, %p97
      %s100 = sadd.s32 %s99, 1
      %p103 = scmp.eq.s32.totalorder %s23, 1
      %p104 = scmp.ne.s32.totalorder %s99, %s101
      %p105 = scmp.eq.s32.totalorder %s23, 0
      %p106 = por %p104, %p105
      %p107 = scmp.ne.s32.totalorder %s99, %s101
      %p108 = scmp.eq.s32.totalorder %s28, 1
      %p109 = por %p107, %p108
      %p110 = scmp.ne.s32.totalorder %s101, %s102
      %p111 = scmp.eq.s32.totalorder %s28, 0
      %p112 = por %p110, %p111
      %p113 = scmp.ne.s32.totalorder %s101, %s102
      %p114 = scmp.eq.s32.totalorder %s29, 1
      %p115 = por %p113, %p114
      %p117 = scmp.ne.s32.totalorder %s102, %s116
      %p118 = scmp.eq.s32.totalorder %s29, 0
      %p119 = por %p117, %p118
      %s121 = sadd.s32 %s120, 1
      %p124 = scmp.eq.s32.totalorder %s23, 1
      %p125 = scmp.ne.s32.totalorder %s120, %s122
      %p126 = scmp.eq.s32.totalorder %s23, 0
      %p127 = por %p125, %p126
      %p128 = scmp.ne.s32.totalorder %s120, %s122
      %p129 = scmp.eq.s32.totalorder %s28, 1
      %p130 = por %p128, %p129
      %p131 = scmp.ne.s32.totalorder %s122, %s123
      %p132 = scmp.eq.s32.totalorder %s28, 0
      %p133 = por %p131, %p132
      %p134 = scmp.ne.s32.totalorder %s122, %s123
      %p135 = scmp.eq.s32.totalorder %s29, 1
      %p136 = por %p134, %p135
      %p138 = scmp.ne.s32.totalorder %s123, %s137
      %p139 = scmp.eq.s32.totalorder %s29, 0
      %p140 = por %p138, %p139
      %s142 = sadd.s32 %s141, 1
      %p145 = scmp.eq.s32.totalorder %s23, 1
      %p146 = scmp.ne.s32.totalorder %s141, %s143
      %p147 = scmp.eq.s32.totalorder %s23, 0
      %p148 = por %p146, %p147
      %p149 = scmp.ne.s32.totalorder %s141, %s143
      %p150 = scmp.eq.s32.totalorder %s28, 1
      %p151 = por %p149, %p150
      %p152 = scmp.ne.s32.totalorder %s143, %s144
      %p153 = scmp.eq.s32.totalorder %s28, 0
      %p154 = por %p152, %p153
      %p155 = scmp.ne.s32.totalorder %s143, %s144
      %p156 = scmp.eq.s32.totalorder %s29, 1
      %p157 = por %p155, %p156
      %p159 = scmp.ne.s32.totalorder %s144, %s158
      %p160 = scmp.eq.s32.totalorder %s29, 0
      %p161 = por %p159, %p160
      %s163 = sadd.s32 %s162, 1
      %p166 = scmp.eq.s32.totalorder %s23, 1
      %p167 = scmp.ne.s32.totalorder %s162, %s164
      %p168 = scmp.eq.s32.totalorder %s23, 0
      %p169 = por %p167, %p168
      %p170 = scmp.ne.s32.totalorder %s162, %s164
      %p171 = scmp.eq.s32.totalorder %s28, 1
      %p172 = por %p170, %p171
      %p173 = scmp.ne.s32.totalorder %s164, %s165
      %p174 = scmp.eq.s32.totalorder %s28, 0
      %p175 = por %p173, %p174
      %p176 = scmp.ne.s32.totalorder %s164, %s165
      %p177 = scmp.eq.s32.totalorder %s29, 1
      %p178 = por %p176, %p177
      %p180 = scmp.ne.s32.totalorder %s165, %s179
      %p181 = scmp.eq.s32.totalorder %s29, 0
      %p182 = por %p180, %p181
      %s184 = sadd.s32 %s183, 1
      %p187 = scmp.eq.s32.totalorder %s23, 1
      %p188 = scmp.ne.s32.totalorder %s183, %s185
      %p189 = scmp.eq.s32.totalorder %s23, 0
      %p190 = por %p188, %p189
      %p191 = scmp.ne.s32.totalorder %s183, %s185
      %p192 = scmp.eq.s32.totalorder %s28, 1
      %p193 = por %p191, %p192
      %p194 = scmp.ne.s32.totalorder %s185, %s186
      %p195 = scmp.eq.s32.totalorder %s28, 0
      %p196 = por %p194, %p195
      %p197 = scmp.ne.s32.totalorder %s185, %s186
      %p198 = scmp.eq.s32.totalorder %s29, 1
      %p199 = por %p197, %p198
      %p201 = scmp.ne.s32.totalorder %s186, %s200
      %p202 = scmp.eq.s32.totalorder %s29, 0
      %p203 = por %p201, %p202
      %s205 = sadd.s32 %s204, 1
      %p208 = scmp.eq.s32.totalorder %s23, 1
      %p209 = scmp.ne.s32.totalorder %s204, %s206
      %p210 = scmp.eq.s32.totalorder %s23, 0
      %p211 = por %p209, %p210
      %p212 = scmp.ne.s32.totalorder %s204, %s206
      %p213 = scmp.eq.s32.totalorder %s28, 1
      %p214 = por %p212, %p213
      %p215 = scmp.ne.s32.totalorder %s206, %s207
      %p216 = scmp.eq.s32.totalorder %s28, 0
      %p217 = por %p215, %p216
      %p218 = scmp.ne.s32.totalorder %s206, %s207
      %p219 = scmp.eq.s32.totalorder %s29, 1
      %p220 = por %p218, %p219
      %p222 = scmp.ne.s32.totalorder %s207, %s221
      %p223 = scmp.eq.s32.totalorder %s29, 0
      %p224 = por %p222, %p223
      %s226 = sadd.s32 %s225, 1
      %p229 = scmp.eq.s32.totalorder %s23, 1
      %p230 = scmp.ne.s32.totalorder %s225, %s227
      %p231 = scmp.eq.s32.totalorder %s23, 0
      %p232 = por %p230, %p231
      %p233 = scmp.ne.s32.totalorder %s225, %s227
      %p234 = scmp.eq.s32.totalorder %s28, 1
      %p235 = por %p233, %p234
      %p236 = scmp.ne.s32.totalorder %s227, %s228
      %p237 = scmp.eq.s32.totalorder %s28, 0
      %p238 = por %p236, %p237
      %p239 = scmp.ne.s32.totalorder %s227, %s228
      %p240 = scmp.eq.s32.totalorder %s29, 1
      %p241 = por %p239, %p240
      %p243 = scmp.ne.s32.totalorder %s228, %s242
      %p244 = scmp.eq.s32.totalorder %s29, 0
      %p245 = por %p243, %p244
      %s247 = sadd.s32 %s246, 1
      %p250 = scmp.eq.s32.totalorder %s23, 1
      %p251 = scmp.ne.s32.totalorder %s246, %s248
      %p252 = scmp.eq.s32.totalorder %s23, 0
      %p253 = por %p251, %p252
      %p254 = scmp.ne.s32.totalorder %s246, %s248
      %p255 = scmp.eq.s32.totalorder %s28, 1
      %p256 = por %p254, %p255
      %p257 = scmp.ne.s32.totalorder %s248, %s249
      %p258 = scmp.eq.s32.totalorder %s28, 0
      %p259 = por %p257, %p258
      %p260 = scmp.ne.s32.totalorder %s248, %s249
      %p261 = scmp.eq.s32.totalorder %s29, 1
      %p262 = por %p260, %p261
      %p264 = scmp.ne.s32.totalorder %s249, %s263
      %p265 = scmp.eq.s32.totalorder %s29, 0
      %p266 = por %p264, %p265
      %s268 = sadd.s32 %s267, 1
      %p271 = scmp.eq.s32.totalorder %s23, 1
      %p272 = scmp.ne.s32.totalorder %s267, %s269
      %p273 = scmp.eq.s32.totalorder %s23, 0
      %p274 = por %p272, %p273
      %p275 = scmp.ne.s32.totalorder %s267, %s269
      %p276 = scmp.eq.s32.totalorder %s28, 1
      %p277 = por %p275, %p276
      %p278 = scmp.ne.s32.totalorder %s269, %s270
      %p279 = scmp.eq.s32.totalorder %s28, 0
      %p280 = por %p278, %p279
      %p281 = scmp.ne.s32.totalorder %s269, %s270
      %p282 = scmp.eq.s32.totalorder %s29, 1
      %p283 = por %p281, %p282
      %p285 = scmp.ne.s32.totalorder %s270, %s284
      %p286 = scmp.eq.s32.totalorder %s29, 0
      %p287 = por %p285, %p286
      %s289 = sadd.s32 %s288, 1
      %p292 = scmp.eq.s32.totalorder %s23, 1
      %p293 = scmp.ne.s32.totalorder %s288, %s290
      %p294 = scmp.eq.s32.totalorder %s23, 0
      %p295 = por %p293, %p294
      %p296 = scmp.ne.s32.totalorder %s288, %s290
      %p297 = scmp.eq.s32.totalorder %s28, 1
      %p298 = por %p296, %p297
      %p299 = scmp.ne.s32.totalorder %s290, %s291
      %p300 = scmp.eq.s32.totalorder %s28, 0
      %p301 = por %p299, %p300
      %p302 = scmp.ne.s32.totalorder %s290, %s291
      %p303 = scmp.eq.s32.totalorder %s29, 1
      %p304 = por %p302, %p303
      %p306 = scmp.ne.s32.totalorder %s291, %s305
      %p307 = scmp.eq.s32.totalorder %s29, 0
      %p308 = por %p306, %p307
      %s310 = sadd.s32 %s309, 1
      %p313 = scmp.eq.s32.totalorder %s23, 1
      %p314 = scmp.ne.s32.totalorder %s309, %s311
      %p315 = scmp.eq.s32.totalorder %s23, 0
      %p316 = por %p314, %p315
      %p317 = scmp.ne.s32.totalorder %s309, %s311
      %p318 = scmp.eq.s32.totalorder %s28, 1
      %p319 = por %p317, %p318
      %p320 = scmp.ne.s32.totalorder %s311, %s312
      %p321 = scmp.eq.s32.totalorder %s28, 0
      %p322 = por %p320, %p321
      %p323 = scmp.ne.s32.totalorder %s311, %s312
      %p324 = scmp.eq.s32.totalorder %s29, 1
      %p325 = por %p323, %p324
      %p327 = scmp.ne.s32.totalorder %s312, %s326
      %p328 = scmp.eq.s32.totalorder %s29, 0
      %p329 = por %p327, %p328
      %s330 = ssub.s32 %s23, %s30
      %p331 = scmp.eq.s32.totalorder %s330, 0
      %s333 = sadd.s32 %s332, 1
      %s334 = scalar_select %p331, %s332, %s333
      %p337 = pneg %p331
      %p338 = scmp.eq.s32.totalorder %s23, 1
      %p339 = por %p337, %p338
      %p340 = scmp.ne.s32.totalorder %s332, %s335
      %p341 = scmp.eq.s32.totalorder %s23, 0
      %p342 = por %p340, %p341
      %p343 = scmp.ne.s32.totalorder %s332, %s335
      %p344 = scmp.eq.s32.totalorder %s28, 1
      %p345 = por %p343, %p344
      %p346 = scmp.ne.s32.totalorder %s335, %s336
      %p347 = scmp.eq.s32.totalorder %s28, 0
      %p348 = por %p346, %p347
      %p349 = scmp.ne.s32.totalorder %s335, %s336
      %p350 = scmp.eq.s32.totalorder %s29, 1
      %p351 = por %p349, %p350
      %p353 = scmp.ne.s32.totalorder %s336, %s352
      %p354 = scmp.eq.s32.totalorder %s29, 0
      %p355 = por %p353, %p354
      %p356 = scmp.le.s32.totalorder 1, %s23
      %p357 = scmp.lt.s32.totalorder %s23, 3
      %p358 = pnand %p356, %p357
      %p359 = pneg %p358
      // Predicated region
      $region9: #{tpu_custom_call.1} parent=5 // pred_check
        _
      $region10: #{tpu_custom_call.1} parent=5 // pred_check_branch
        %361 = sbr.rel (%p358) target = $region12
      $region11: #{tpu_custom_call.1} parent=5 // pred_region
        %s362 = ssub.s32 %s23, 1
        // Predicated region
        $region13: #{tpu_custom_call.1} parent=11 // pred_check
          %p363 = pneg %p70
        $region14: #{tpu_custom_call.1} parent=11 // pred_check_branch
          %365 = sbr.rel (%p363) target = $region16
        $region15: #{tpu_custom_call.1} parent=11 // pred_region
          _
        $region16: #{tpu_custom_call.1} parent=11 // pred_fallthru
          _
        // Predicated region
        $region17: #{tpu_custom_call.1} parent=11 // pred_check
          %p366 = pneg %p91
        $region18: #{tpu_custom_call.1} parent=11 // pred_check_branch
          %368 = sbr.rel (%p366) target = $region20
        $region19: #{tpu_custom_call.1} parent=11 // pred_region
          _
        $region20: #{tpu_custom_call.1} parent=11 // pred_fallthru
          _
        // Predicated region
        $region21: #{tpu_custom_call.1} parent=11 // pred_check
          %p369 = pneg %p112
        $region22: #{tpu_custom_call.1} parent=11 // pred_check_branch
          %371 = sbr.rel (%p369) target = $region24
        $region23: #{tpu_custom_call.1} parent=11 // pred_region
          _
        $region24: #{tpu_custom_call.1} parent=11 // pred_fallthru
          _
        // Predicated region
        $region25: #{tpu_custom_call.1} parent=11 // pred_check
          %p372 = pneg %p133
        $region26: #{tpu_custom_call.1} parent=11 // pred_check_branch
          %374 = sbr.rel (%p372) target = $region28
        $region27: #{tpu_custom_call.1} parent=11 // pred_region
          _
        $region28: #{tpu_custom_call.1} parent=11 // pred_fallthru
          _
        // Predicated region
        $region29: #{tpu_custom_call.1} parent=11 // pred_check
          %p375 = pneg %p154
        $region30: #{tpu_custom_call.1} parent=11 // pred_check_branch
          %377 = sbr.rel (%p375) target = $region32
        $region31: #{tpu_custom_call.1} parent=11 // pred_region
          _
        $region32: #{tpu_custom_call.1} parent=11 // pred_fallthru
          _
        // Predicated region
        $region33: #{tpu_custom_call.1} parent=11 // pred_check
          %p378 = pneg %p175
        $region34: #{tpu_custom_call.1} parent=11 // pred_check_branch
          %380 = sbr.rel (%p378) target = $region36
        $region35: #{tpu_custom_call.1} parent=11 // pred_region
          _
        $region36: #{tpu_custom_call.1} parent=11 // pred_fallthru
          _
        // Predicated region
        $region37: #{tpu_custom_call.1} parent=11 // pred_check
          %p381 = pneg %p196
        $region38: #{tpu_custom_call.1} parent=11 // pred_check_branch
          %383 = sbr.rel (%p381) target = $region40
        $region39: #{tpu_custom_call.1} parent=11 // pred_region
          _
        $region40: #{tpu_custom_call.1} parent=11 // pred_fallthru
          _
        // Predicated region
        $region41: #{tpu_custom_call.1} parent=11 // pred_check
          %p384 = pneg %p217
        $region42: #{tpu_custom_call.1} parent=11 // pred_check_branch
          %386 = sbr.rel (%p384) target = $region44
        $region43: #{tpu_custom_call.1} parent=11 // pred_region
          _
        $region44: #{tpu_custom_call.1} parent=11 // pred_fallthru
          _
        // Predicated region
        $region45: #{tpu_custom_call.1} parent=11 // pred_check
          %p387 = pneg %p238
        $region46: #{tpu_custom_call.1} parent=11 // pred_check_branch
          %389 = sbr.rel (%p387) target = $region48
        $region47: #{tpu_custom_call.1} parent=11 // pred_region
          _
        $region48: #{tpu_custom_call.1} parent=11 // pred_fallthru
          _
        // Predicated region
        $region49: #{tpu_custom_call.1} parent=11 // pred_check
          %p390 = pneg %p259
        $region50: #{tpu_custom_call.1} parent=11 // pred_check_branch
          %392 = sbr.rel (%p390) target = $region52
        $region51: #{tpu_custom_call.1} parent=11 // pred_region
          _
        $region52: #{tpu_custom_call.1} parent=11 // pred_fallthru
          _
        // Predicated region
        $region53: #{tpu_custom_call.1} parent=11 // pred_check
          %p393 = pneg %p280
        $region54: #{tpu_custom_call.1} parent=11 // pred_check_branch
          %395 = sbr.rel (%p393) target = $region56
        $region55: #{tpu_custom_call.1} parent=11 // pred_region
          _
        $region56: #{tpu_custom_call.1} parent=11 // pred_fallthru
          _
        // Predicated region
        $region57: #{tpu_custom_call.1} parent=11 // pred_check
          %p396 = pneg %p301
        $region58: #{tpu_custom_call.1} parent=11 // pred_check_branch
          %398 = sbr.rel (%p396) target = $region60
        $region59: #{tpu_custom_call.1} parent=11 // pred_region
          _
        $region60: #{tpu_custom_call.1} parent=11 // pred_fallthru
          _
        // Predicated region
        $region61: #{tpu_custom_call.1} parent=11 // pred_check
          %p399 = pneg %p322
        $region62: #{tpu_custom_call.1} parent=11 // pred_check_branch
          %401 = sbr.rel (%p399) target = $region64
        $region63: #{tpu_custom_call.1} parent=11 // pred_region
          _
        $region64: #{tpu_custom_call.1} parent=11 // pred_fallthru
          _
      $region12: #{tpu_custom_call.1} parent=5 // pred_fallthru
        _
      %p402 = scmp.lt.s32.totalorder %s23, 2
      // Predicated region
      $region65: #{tpu_custom_call.1} parent=5 // pred_check
        %p403 = pneg %p402
      $region66: #{tpu_custom_call.1} parent=5 // pred_check_branch
        %405 = sbr.rel (%p403) target = $region68
      $region67: #{tpu_custom_call.1} parent=5 // pred_region
        // Predicated region
        $region69: #{tpu_custom_call.1} parent=67 // pred_check
          %p406 = pneg %p43
        $region70: #{tpu_custom_call.1} parent=67 // pred_check_branch
          %408 = sbr.rel (%p406) target = $region72
        $region71: #{tpu_custom_call.1} parent=67 // pred_region
          %p409 = scmp.lt.s32.totalorder %s23, 1
          %s410 = scalar_select %p409, %s23, 1
          %s411 = smul.addr %s410, 8
          %s412 = smul.addr %s411, 8
          %s413 = scalar_lea.vmem %s0, %s412
        $region72: #{tpu_custom_call.1} parent=67 // pred_fallthru
          _
      $region68: #{tpu_custom_call.1} parent=5 // pred_fallthru
        _
      %p414 = scmp.le.s32.totalorder 1, %s23
      %p415 = scmp.lt.s32.totalorder %s23, 3
      %p416 = pnand %p414, %p415
      %p417 = pneg %p416
      // Predicated region
      $region73: #{tpu_custom_call.1} parent=5 // pred_check
        _
      $region74: #{tpu_custom_call.1} parent=5 // pred_check_branch
        %419 = sbr.rel (%p416) target = $region76
      $region75: #{tpu_custom_call.1} parent=5 // pred_region
        %s420 = ssub.s32 %s23, 1
        %p421 = scmp.lt.s32.totalorder %s28, 1
        %s422 = scalar_select %p421, %s28, 1
        %s423 = smul.addr %s422, 8
        %s424 = smul.addr %s423, 8
        %s425 = scalar_lea.vmem %s0, %s424
        %p426 = pneg %p49
        %p427 = pneg %p46
        %p428 = pneg %p70
        %p429 = pneg %p67
        %p430 = pneg %p91
        %p431 = pneg %p88
        %p432 = pneg %p112
        %p433 = pneg %p109
        %p434 = pneg %p133
        %p435 = pneg %p130
        %p436 = pneg %p154
        %p437 = pneg %p151
        %p438 = pneg %p175
        %p439 = pneg %p172
        %p440 = pneg %p196
        %p441 = pneg %p193
        %p442 = pneg %p217
        %p443 = pneg %p214
        %p444 = pneg %p238
        %p445 = pneg %p235
        %p446 = pneg %p259
        %p447 = pneg %p256
        %p448 = pneg %p280
        %p449 = pneg %p277
        %p450 = pneg %p301
        %p451 = pneg %p298
        %p452 = pneg %p322
        %p453 = pneg %p319
        %p454 = pneg %p348
        %p455 = pneg %p345
        %s456 = sand.u32 %s335, 1
        %s457 = scalar_lea.sflag [#allocation5], %s456
        %s458 = sand.u32 %s335, 1
        %s459 = smul.addr %s458, 64
        %s460 = scalar_lea.vmem [#allocation4], %s459
        %p461 = scmp.lt.s32.totalorder %s28, 1
        %s462 = scalar_select %p461, %s28, 1
        %s463 = smul.addr %s462, 8
        %s464 = smul.addr %s463, 8
        %s465 = scalar_lea.vmem %s0, %s464
        %vm467 = vcmask 523264
        %468 = vst.msk [vmem:[#allocation2] sm:$0xff] %vm467, 0.0
        %vm469 = vcmask 517120
        %470 = vst.msk [vmem:[#allocation2 + $0x8] sm:$0x3] %vm469, 0.0
        %s471 = scalar_lea.vmem [#allocation2], 144
        %472 = vst.msk [vmem:[%s471] sm:$0xff] %vm467, 0.0
        %473 = vst.msk [vmem:[%s471 + $0x8] sm:$0x3] %vm469, 0.0
        %s474 = scalar_lea.vmem [#allocation2], 16
        %vm475 = vcmask 516096
        %476 = vst.msk [vmem:[%s474] sm:$0x1] %vm475, 0.0
        %477 = vst.msk [vmem:[%s474 + $0x10] sm:$0x1] %vm475, 0.0
        %478 = vst.msk [vmem:[%s474 + $0x20] sm:$0x1] %vm475, 0.0
        %479 = vst.msk [vmem:[%s474 + $0x30] sm:$0x1] %vm475, 0.0
        %480 = vst.msk [vmem:[%s474 + $0x40] sm:$0x1] %vm475, 0.0
        %481 = vst.msk [vmem:[%s474 + $0x50] sm:$0x1] %vm475, 0.0
        %482 = vst.msk [vmem:[%s474 + $0x60] sm:$0x1] %vm475, 0.0
        %483 = vst.msk [vmem:[%s474 + $0x70] sm:$0x1] %vm475, 0.0
        %484 = vst.msk [vmem:[%s474 + $0x9] sm:$0x1] %vm475, 0.0
        %485 = vst.msk [vmem:[%s474 + $0x19] sm:$0x1] %vm475, 0.0
        %486 = vst.msk [vmem:[%s474 + $0x29] sm:$0x1] %vm475, 0.0
        %487 = vst.msk [vmem:[%s474 + $0x39] sm:$0x1] %vm475, 0.0
        %488 = vst.msk [vmem:[%s474 + $0x49] sm:$0x1] %vm475, 0.0
        %489 = vst.msk [vmem:[%s474 + $0x59] sm:$0x1] %vm475, 0.0
        %490 = vst.msk [vmem:[%s474 + $0x69] sm:$0x1] %vm475, 0.0
        %491 = vst.msk [vmem:[%s474 + $0x79] sm:$0x1] %vm475, 0.0
        %v492 = vld [vmem:[%s465] sm:$0xff]
        %v493 = vld [vmem:[%s465 + $0x8] sm:$0xff]
        %v494 = vld [vmem:[%s465 + $0x10] sm:$0xff]
        %v495 = vld [vmem:[%s465 + $0x18] sm:$0xff]
        %v496 = vld [vmem:[%s465 + $0x20] sm:$0xff]
        %v497 = vld [vmem:[%s465 + $0x28] sm:$0xff]
        %v498 = vld [vmem:[%s465 + $0x30] sm:$0xff]
        %v499 = vld [vmem:[%s465 + $0x38] sm:$0xff]
        %500 = vst.msk [vmem:[%s474 + $0x1] sm:$0xff] %vm467, %v492
        %501 = vst.msk [vmem:[%s474 + $0x11] sm:$0xff] %vm467, %v493
        %502 = vst.msk [vmem:[%s474 + $0x21] sm:$0xff] %vm467, %v494
        %503 = vst.msk [vmem:[%s474 + $0x31] sm:$0xff] %vm467, %v495
        %504 = vst.msk [vmem:[%s474 + $0x41] sm:$0xff] %vm467, %v496
        %505 = vst.msk [vmem:[%s474 + $0x51] sm:$0xff] %vm467, %v497
        %506 = vst.msk [vmem:[%s474 + $0x61] sm:$0xff] %vm467, %v498
        %507 = vst.msk [vmem:[%s474 + $0x71] sm:$0xff] %vm467, %v499
        %v508 = vld [vmem:[#allocation2] sm:$0xff]
        %v509 = vld [vmem:[#allocation2 + $0x10] sm:$0xff]
        %v510 = vld [vmem:[#allocation2 + $0x20] sm:$0xff]
        %v511 = vld [vmem:[#allocation2 + $0x30] sm:$0xff]
        %v512 = vld [vmem:[#allocation2 + $0x40] sm:$0xff]
        %v513 = vld [vmem:[#allocation2 + $0x50] sm:$0xff]
        %v514 = vld [vmem:[#allocation2 + $0x60] sm:$0xff]
        %v515 = vld [vmem:[#allocation2 + $0x70] sm:$0xff]
        %v516 = vpack.c.bf16 %v508, %v508
        %v517 = vpack.c.bf16 %v509, %v509
        %v518 = vpack.c.bf16 %v510, %v510
        %v519 = vpack.c.bf16 %v511, %v511
        %v520 = vpack.c.bf16 %v512, %v512
        %v521 = vpack.c.bf16 %v513, %v513
        %v522 = vpack.c.bf16 %v514, %v514
        %v523 = vpack.c.bf16 %v515, %v515
        %vm524 = vcmask 519168
        %525 = vst.msk [vmem:[#allocation3] sm:$0xf] %vm524, %v516
        %526 = vst.msk [vmem:[#allocation3 + $0x14] sm:$0xf] %vm524, %v517
        %527 = vst.msk [vmem:[#allocation3 + $0x28] sm:$0xf] %vm524, %v518
        %528 = vst.msk [vmem:[#allocation3 + $0x3c] sm:$0xf] %vm524, %v519
        %529 = vst.msk [vmem:[#allocation3 + $0x50] sm:$0xf] %vm524, %v520
        %530 = vst.msk [vmem:[#allocation3 + $0x64] sm:$0xf] %vm524, %v521
        %531 = vst.msk [vmem:[#allocation3 + $0x78] sm:$0xf] %vm524, %v522
        %532 = vst.msk [vmem:[#allocation3 + $0x8c] sm:$0xf] %vm524, %v523
        %v533 = vld [vmem:[#allocation2 + $0x1] sm:$0xff]
        %v534 = vld [vmem:[#allocation2 + $0x11] sm:$0xff]
        %v535 = vld [vmem:[#allocation2 + $0x21] sm:$0xff]
        %v536 = vld [vmem:[#allocation2 + $0x31] sm:$0xff]
        %v537 = vld [vmem:[#allocation2 + $0x41] sm:$0xff]
        %v538 = vld [vmem:[#allocation2 + $0x51] sm:$0xff]
        %v539 = vld [vmem:[#allocation2 + $0x61] sm:$0xff]
        %v540 = vld [vmem:[#allocation2 + $0x71] sm:$0xff]
        %v541 = vpack.c.bf16 %v533, %v533
        %v542 = vpack.c.bf16 %v534, %v534
        %v543 = vpack.c.bf16 %v535, %v535
        %v544 = vpack.c.bf16 %v536, %v536
        %v545 = vpack.c.bf16 %v537, %v537
        %v546 = vpack.c.bf16 %v538, %v538
        %v547 = vpack.c.bf16 %v539, %v539
        %v548 = vpack.c.bf16 %v540, %v540
        %v557 = vunpack.c.l.b16 %v541
        %v558 = vunpack.c.l.b16 %v542
        %v559 = vunpack.c.l.b16 %v543
        %v560 = vunpack.c.l.b16 %v544
        %v561 = vunpack.c.l.b16 %v545
        %v562 = vunpack.c.l.b16 %v546
        %v563 = vunpack.c.l.b16 %v547
        %v564 = vunpack.c.l.b16 %v548
        %v565 = vpack.c.b16 %v557, %v557
        %v566 = vpack.c.b16 %v558, %v558
        %v567 = vpack.c.b16 %v559, %v559
        %v568 = vpack.c.b16 %v560, %v560
        %v569 = vpack.c.b16 %v561, %v561
        %v570 = vpack.c.b16 %v562, %v562
        %v571 = vpack.c.b16 %v563, %v563
        %v572 = vpack.c.b16 %v564, %v564
        %573 = vrot.lane.b32.xlu0 %v565, 64
        %v574 = vpop.permute.xlu0 %573
        %575 = vrot.lane.b32.xlu0 %v566, 64
        %v576 = vpop.permute.xlu0 %575
        %577 = vrot.lane.b32.xlu0 %v567, 64
        %v578 = vpop.permute.xlu0 %577
        %579 = vrot.lane.b32.xlu0 %v568, 64
        %v580 = vpop.permute.xlu0 %579
        %581 = vrot.lane.b32.xlu0 %v569, 64
        %v582 = vpop.permute.xlu0 %581
        %583 = vrot.lane.b32.xlu0 %v570, 64
        %v584 = vpop.permute.xlu0 %583
        %585 = vrot.lane.b32.xlu0 %v571, 64
        %v586 = vpop.permute.xlu0 %585
        %587 = vrot.lane.b32.xlu0 %v572, 64
        %v588 = vpop.permute.xlu0 %587
        %vm597 = vcmask 1043968
        %598 = vst.msk [vmem:[#allocation3] sm:$0xf] %vm597, %v574
        %599 = vst.msk [vmem:[#allocation3 + $0x14] sm:$0xf] %vm597, %v576
        %600 = vst.msk [vmem:[#allocation3 + $0x28] sm:$0xf] %vm597, %v578
        %601 = vst.msk [vmem:[#allocation3 + $0x3c] sm:$0xf] %vm597, %v580
        %602 = vst.msk [vmem:[#allocation3 + $0x50] sm:$0xf] %vm597, %v582
        %603 = vst.msk [vmem:[#allocation3 + $0x64] sm:$0xf] %vm597, %v584
        %604 = vst.msk [vmem:[#allocation3 + $0x78] sm:$0xf] %vm597, %v586
        %605 = vst.msk [vmem:[#allocation3 + $0x8c] sm:$0xf] %vm597, %v588
        %v606 = vld [vmem:[#allocation2 + $0x2] sm:$0xff]
        %v607 = vld [vmem:[#allocation2 + $0x12] sm:$0xff]
        %v608 = vld [vmem:[#allocation2 + $0x22] sm:$0xff]
        %v609 = vld [vmem:[#allocation2 + $0x32] sm:$0xff]
        %v610 = vld [vmem:[#allocation2 + $0x42] sm:$0xff]
        %v611 = vld [vmem:[#allocation2 + $0x52] sm:$0xff]
        %v612 = vld [vmem:[#allocation2 + $0x62] sm:$0xff]
        %v613 = vld [vmem:[#allocation2 + $0x72] sm:$0xff]
        %v614 = vpack.c.bf16 %v606, %v606
        %v615 = vpack.c.bf16 %v607, %v607
        %v616 = vpack.c.bf16 %v608, %v608
        %v617 = vpack.c.bf16 %v609, %v609
        %v618 = vpack.c.bf16 %v610, %v610
        %v619 = vpack.c.bf16 %v611, %v611
        %v620 = vpack.c.bf16 %v612, %v612
        %v621 = vpack.c.bf16 %v613, %v613
        %622 = vst.msk [vmem:[#allocation3 + $0x4] sm:$0xf] %vm524, %v614
        %623 = vst.msk [vmem:[#allocation3 + $0x18] sm:$0xf] %vm524, %v615
        %624 = vst.msk [vmem:[#allocation3 + $0x2c] sm:$0xf] %vm524, %v616
        %625 = vst.msk [vmem:[#allocation3 + $0x40] sm:$0xf] %vm524, %v617
        %626 = vst.msk [vmem:[#allocation3 + $0x54] sm:$0xf] %vm524, %v618
        %627 = vst.msk [vmem:[#allocation3 + $0x68] sm:$0xf] %vm524, %v619
        %628 = vst.msk [vmem:[#allocation3 + $0x7c] sm:$0xf] %vm524, %v620
        %629 = vst.msk [vmem:[#allocation3 + $0x90] sm:$0xf] %vm524, %v621
        %v630 = vld [vmem:[%s474] sm:$0xff]
        %v631 = vld [vmem:[%s474 + $0x10] sm:$0xff]
        %v632 = vld [vmem:[%s474 + $0x20] sm:$0xff]
        %v633 = vld [vmem:[%s474 + $0x30] sm:$0xff]
        %v634 = vld [vmem:[%s474 + $0x40] sm:$0xff]
        %v635 = vld [vmem:[%s474 + $0x50] sm:$0xff]
        %v636 = vld [vmem:[%s474 + $0x60] sm:$0xff]
        %v637 = vld [vmem:[%s474 + $0x70] sm:$0xff]
        %v638 = vpack.c.bf16 %v630, %v630
        %v639 = vpack.c.bf16 %v631, %v631
        %v640 = vpack.c.bf16 %v632, %v632
        %v641 = vpack.c.bf16 %v633, %v633
        %v642 = vpack.c.bf16 %v634, %v634
        %v643 = vpack.c.bf16 %v635, %v635
        %v644 = vpack.c.bf16 %v636, %v636
        %v645 = vpack.c.bf16 %v637, %v637
        %v654 = vunpack.c.l.b16 %v638
        %v655 = vunpack.c.l.b16 %v639
        %v656 = vunpack.c.l.b16 %v640
        %v657 = vunpack.c.l.b16 %v641
        %v658 = vunpack.c.l.b16 %v642
        %v659 = vunpack.c.l.b16 %v643
        %v660 = vunpack.c.l.b16 %v644
        %v661 = vunpack.c.l.b16 %v645
        %v662 = vpack.c.b16 %v654, %v654
        %v663 = vpack.c.b16 %v655, %v655
        %v664 = vpack.c.b16 %v656, %v656
        %v665 = vpack.c.b16 %v657, %v657
        %v666 = vpack.c.b16 %v658, %v658
        %v667 = vpack.c.b16 %v659, %v659
        %v668 = vpack.c.b16 %v660, %v660
        %v669 = vpack.c.b16 %v661, %v661
        %670 = vrot.lane.b32.xlu0 %v662, 64
        %v671 = vpop.permute.xlu0 %670
        %672 = vrot.lane.b32.xlu0 %v663, 64
        %v673 = vpop.permute.xlu0 %672
        %674 = vrot.lane.b32.xlu0 %v664, 64
        %v675 = vpop.permute.xlu0 %674
        %676 = vrot.lane.b32.xlu0 %v665, 64
        %v677 = vpop.permute.xlu0 %676
        %678 = vrot.lane.b32.xlu0 %v666, 64
        %v679 = vpop.permute.xlu0 %678
        %680 = vrot.lane.b32.xlu0 %v667, 64
        %v681 = vpop.permute.xlu0 %680
        %682 = vrot.lane.b32.xlu0 %v668, 64
        %v683 = vpop.permute.xlu0 %682
        %684 = vrot.lane.b32.xlu0 %v669, 64
        %v685 = vpop.permute.xlu0 %684
        %694 = vst.msk [vmem:[#allocation3 + $0x4] sm:$0xf] %vm597, %v671
        %695 = vst.msk [vmem:[#allocation3 + $0x18] sm:$0xf] %vm597, %v673
        %696 = vst.msk [vmem:[#allocation3 + $0x2c] sm:$0xf] %vm597, %v675
        %697 = vst.msk [vmem:[#allocation3 + $0x40] sm:$0xf] %vm597, %v677
        %698 = vst.msk [vmem:[#allocation3 + $0x54] sm:$0xf] %vm597, %v679
        %699 = vst.msk [vmem:[#allocation3 + $0x68] sm:$0xf] %vm597, %v681
        %700 = vst.msk [vmem:[#allocation3 + $0x7c] sm:$0xf] %vm597, %v683
        %701 = vst.msk [vmem:[#allocation3 + $0x90] sm:$0xf] %vm597, %v685
        %v702 = vld [vmem:[%s474 + $0x1] sm:$0xff]
        %v703 = vld [vmem:[%s474 + $0x11] sm:$0xff]
        %v704 = vld [vmem:[%s474 + $0x21] sm:$0xff]
        %v705 = vld [vmem:[%s474 + $0x31] sm:$0xff]
        %v706 = vld [vmem:[%s474 + $0x41] sm:$0xff]
        %v707 = vld [vmem:[%s474 + $0x51] sm:$0xff]
        %v708 = vld [vmem:[%s474 + $0x61] sm:$0xff]
        %v709 = vld [vmem:[%s474 + $0x71] sm:$0xff]
        %v710 = vpack.c.bf16 %v702, %v702
        %v711 = vpack.c.bf16 %v703, %v703
        %v712 = vpack.c.bf16 %v704, %v704
        %v713 = vpack.c.bf16 %v705, %v705
        %v714 = vpack.c.bf16 %v706, %v706
        %v715 = vpack.c.bf16 %v707, %v707
        %v716 = vpack.c.bf16 %v708, %v708
        %v717 = vpack.c.bf16 %v709, %v709
        %718 = vst.msk [vmem:[#allocation3 + $0x8] sm:$0xf] %vm524, %v710
        %719 = vst.msk [vmem:[#allocation3 + $0x1c] sm:$0xf] %vm524, %v711
        %720 = vst.msk [vmem:[#allocation3 + $0x30] sm:$0xf] %vm524, %v712
        %721 = vst.msk [vmem:[#allocation3 + $0x44] sm:$0xf] %vm524, %v713
        %722 = vst.msk [vmem:[#allocation3 + $0x58] sm:$0xf] %vm524, %v714
        %723 = vst.msk [vmem:[#allocation3 + $0x6c] sm:$0xf] %vm524, %v715
        %724 = vst.msk [vmem:[#allocation3 + $0x80] sm:$0xf] %vm524, %v716
        %725 = vst.msk [vmem:[#allocation3 + $0x94] sm:$0xf] %vm524, %v717
        %v726 = vld [vmem:[%s474 + $0x2] sm:$0xff]
        %v727 = vld [vmem:[%s474 + $0x12] sm:$0xff]
        %v728 = vld [vmem:[%s474 + $0x22] sm:$0xff]
        %v729 = vld [vmem:[%s474 + $0x32] sm:$0xff]
        %v730 = vld [vmem:[%s474 + $0x42] sm:$0xff]
        %v731 = vld [vmem:[%s474 + $0x52] sm:$0xff]
        %v732 = vld [vmem:[%s474 + $0x62] sm:$0xff]
        %v733 = vld [vmem:[%s474 + $0x72] sm:$0xff]
        %v734 = vpack.c.bf16 %v726, %v726
        %v735 = vpack.c.bf16 %v727, %v727
        %v736 = vpack.c.bf16 %v728, %v728
        %v737 = vpack.c.bf16 %v729, %v729
        %v738 = vpack.c.bf16 %v730, %v730
        %v739 = vpack.c.bf16 %v731, %v731
        %v740 = vpack.c.bf16 %v732, %v732
        %v741 = vpack.c.bf16 %v733, %v733
        %v750 = vunpack.c.l.b16 %v734
        %v751 = vunpack.c.l.b16 %v735
        %v752 = vunpack.c.l.b16 %v736
        %v753 = vunpack.c.l.b16 %v737
        %v754 = vunpack.c.l.b16 %v738
        %v755 = vunpack.c.l.b16 %v739
        %v756 = vunpack.c.l.b16 %v740
        %v757 = vunpack.c.l.b16 %v741
        %v758 = vpack.c.b16 %v750, %v750
        %v759 = vpack.c.b16 %v751, %v751
        %v760 = vpack.c.b16 %v752, %v752
        %v761 = vpack.c.b16 %v753, %v753
        %v762 = vpack.c.b16 %v754, %v754
        %v763 = vpack.c.b16 %v755, %v755
        %v764 = vpack.c.b16 %v756, %v756
        %v765 = vpack.c.b16 %v757, %v757
        %766 = vrot.lane.b32.xlu0 %v758, 64
        %v767 = vpop.permute.xlu0 %766
        %768 = vrot.lane.b32.xlu0 %v759, 64
        %v769 = vpop.permute.xlu0 %768
        %770 = vrot.lane.b32.xlu0 %v760, 64
        %v771 = vpop.permute.xlu0 %770
        %772 = vrot.lane.b32.xlu0 %v761, 64
        %v773 = vpop.permute.xlu0 %772
        %774 = vrot.lane.b32.xlu0 %v762, 64
        %v775 = vpop.permute.xlu0 %774
        %776 = vrot.lane.b32.xlu0 %v763, 64
        %v777 = vpop.permute.xlu0 %776
        %778 = vrot.lane.b32.xlu0 %v764, 64
        %v779 = vpop.permute.xlu0 %778
        %780 = vrot.lane.b32.xlu0 %v765, 64
        %v781 = vpop.permute.xlu0 %780
        %790 = vst.msk [vmem:[#allocation3 + $0x8] sm:$0xf] %vm597, %v767
        %791 = vst.msk [vmem:[#allocation3 + $0x1c] sm:$0xf] %vm597, %v769
        %792 = vst.msk [vmem:[#allocation3 + $0x30] sm:$0xf] %vm597, %v771
        %793 = vst.msk [vmem:[#allocation3 + $0x44] sm:$0xf] %vm597, %v773
        %794 = vst.msk [vmem:[#allocation3 + $0x58] sm:$0xf] %vm597, %v775
        %795 = vst.msk [vmem:[#allocation3 + $0x6c] sm:$0xf] %vm597, %v777
        %796 = vst.msk [vmem:[#allocation3 + $0x80] sm:$0xf] %vm597, %v779
        %797 = vst.msk [vmem:[#allocation3 + $0x94] sm:$0xf] %vm597, %v781
        %s798 = scalar_lea.vmem [#allocation2], 32
        %v799 = vld [vmem:[%s798] sm:$0xff]
        %v800 = vld [vmem:[%s798 + $0x10] sm:$0xff]
        %v801 = vld [vmem:[%s798 + $0x20] sm:$0xff]
        %v802 = vld [vmem:[%s798 + $0x30] sm:$0xff]
        %v803 = vld [vmem:[%s798 + $0x40] sm:$0xff]
        %v804 = vld [vmem:[%s798 + $0x50] sm:$0xff]
        %v805 = vld [vmem:[%s798 + $0x60] sm:$0xff]
        %v806 = vld [vmem:[%s798 + $0x70] sm:$0xff]
        %v807 = vpack.c.bf16 %v799, %v799
        %v808 = vpack.c.bf16 %v800, %v800
        %v809 = vpack.c.bf16 %v801, %v801
        %v810 = vpack.c.bf16 %v802, %v802
        %v811 = vpack.c.bf16 %v803, %v803
        %v812 = vpack.c.bf16 %v804, %v804
        %v813 = vpack.c.bf16 %v805, %v805
        %v814 = vpack.c.bf16 %v806, %v806
        %815 = vst.msk [vmem:[#allocation3 + $0xc] sm:$0xf] %vm524, %v807
        %816 = vst.msk [vmem:[#allocation3 + $0x20] sm:$0xf] %vm524, %v808
        %817 = vst.msk [vmem:[#allocation3 + $0x34] sm:$0xf] %vm524, %v809
        %818 = vst.msk [vmem:[#allocation3 + $0x48] sm:$0xf] %vm524, %v810
        %819 = vst.msk [vmem:[#allocation3 + $0x5c] sm:$0xf] %vm524, %v811
        %820 = vst.msk [vmem:[#allocation3 + $0x70] sm:$0xf] %vm524, %v812
        %821 = vst.msk [vmem:[#allocation3 + $0x84] sm:$0xf] %vm524, %v813
        %822 = vst.msk [vmem:[#allocation3 + $0x98] sm:$0xf] %vm524, %v814
        %v823 = vld [vmem:[%s798 + $0x1] sm:$0xff]
        %v824 = vld [vmem:[%s798 + $0x11] sm:$0xff]
        %v825 = vld [vmem:[%s798 + $0x21] sm:$0xff]
        %v826 = vld [vmem:[%s798 + $0x31] sm:$0xff]
        %v827 = vld [vmem:[%s798 + $0x41] sm:$0xff]
        %v828 = vld [vmem:[%s798 + $0x51] sm:$0xff]
        %v829 = vld [vmem:[%s798 + $0x61] sm:$0xff]
        %v830 = vld [vmem:[%s798 + $0x71] sm:$0xff]
        %v831 = vpack.c.bf16 %v823, %v823
        %v832 = vpack.c.bf16 %v824, %v824
        %v833 = vpack.c.bf16 %v825, %v825
        %v834 = vpack.c.bf16 %v826, %v826
        %v835 = vpack.c.bf16 %v827, %v827
        %v836 = vpack.c.bf16 %v828, %v828
        %v837 = vpack.c.bf16 %v829, %v829
        %v838 = vpack.c.bf16 %v830, %v830
        %v847 = vunpack.c.l.b16 %v831
        %v848 = vunpack.c.l.b16 %v832
        %v849 = vunpack.c.l.b16 %v833
        %v850 = vunpack.c.l.b16 %v834
        %v851 = vunpack.c.l.b16 %v835
        %v852 = vunpack.c.l.b16 %v836
        %v853 = vunpack.c.l.b16 %v837
        %v854 = vunpack.c.l.b16 %v838
        %v855 = vpack.c.b16 %v847, %v847
        %v856 = vpack.c.b16 %v848, %v848
        %v857 = vpack.c.b16 %v849, %v849
        %v858 = vpack.c.b16 %v850, %v850
        %v859 = vpack.c.b16 %v851, %v851
        %v860 = vpack.c.b16 %v852, %v852
        %v861 = vpack.c.b16 %v853, %v853
        %v862 = vpack.c.b16 %v854, %v854
        %863 = vrot.lane.b32.xlu0 %v855, 64
        %v864 = vpop.permute.xlu0 %863
        %865 = vrot.lane.b32.xlu0 %v856, 64
        %v866 = vpop.permute.xlu0 %865
        %867 = vrot.lane.b32.xlu0 %v857, 64
        %v868 = vpop.permute.xlu0 %867
        %869 = vrot.lane.b32.xlu0 %v858, 64
        %v870 = vpop.permute.xlu0 %869
        %871 = vrot.lane.b32.xlu0 %v859, 64
        %v872 = vpop.permute.xlu0 %871
        %873 = vrot.lane.b32.xlu0 %v860, 64
        %v874 = vpop.permute.xlu0 %873
        %875 = vrot.lane.b32.xlu0 %v861, 64
        %v876 = vpop.permute.xlu0 %875
        %877 = vrot.lane.b32.xlu0 %v862, 64
        %v878 = vpop.permute.xlu0 %877
        %887 = vst.msk [vmem:[#allocation3 + $0xc] sm:$0xf] %vm597, %v864
        %888 = vst.msk [vmem:[#allocation3 + $0x20] sm:$0xf] %vm597, %v866
        %889 = vst.msk [vmem:[#allocation3 + $0x34] sm:$0xf] %vm597, %v868
        %890 = vst.msk [vmem:[#allocation3 + $0x48] sm:$0xf] %vm597, %v870
        %891 = vst.msk [vmem:[#allocation3 + $0x5c] sm:$0xf] %vm597, %v872
        %892 = vst.msk [vmem:[#allocation3 + $0x70] sm:$0xf] %vm597, %v874
        %893 = vst.msk [vmem:[#allocation3 + $0x84] sm:$0xf] %vm597, %v876
        %894 = vst.msk [vmem:[#allocation3 + $0x98] sm:$0xf] %vm597, %v878
        %v895 = vld [vmem:[%s798 + $0x2] sm:$0xff]
        %v896 = vld [vmem:[%s798 + $0x12] sm:$0xff]
        %v897 = vld [vmem:[%s798 + $0x22] sm:$0xff]
        %v898 = vld [vmem:[%s798 + $0x32] sm:$0xff]
        %v899 = vld [vmem:[%s798 + $0x42] sm:$0xff]
        %v900 = vld [vmem:[%s798 + $0x52] sm:$0xff]
        %v901 = vld [vmem:[%s798 + $0x62] sm:$0xff]
        %v902 = vld [vmem:[%s798 + $0x72] sm:$0xff]
        %v903 = vpack.c.bf16 %v895, %v895
        %v904 = vpack.c.bf16 %v896, %v896
        %v905 = vpack.c.bf16 %v897, %v897
        %v906 = vpack.c.bf16 %v898, %v898
        %v907 = vpack.c.bf16 %v899, %v899
        %v908 = vpack.c.bf16 %v900, %v900
        %v909 = vpack.c.bf16 %v901, %v901
        %v910 = vpack.c.bf16 %v902, %v902
        %911 = vst.msk [vmem:[#allocation3 + $0x10] sm:$0xf] %vm524, %v903
        %912 = vst.msk [vmem:[#allocation3 + $0x24] sm:$0xf] %vm524, %v904
        %913 = vst.msk [vmem:[#allocation3 + $0x38] sm:$0xf] %vm524, %v905
        %914 = vst.msk [vmem:[#allocation3 + $0x4c] sm:$0xf] %vm524, %v906
        %915 = vst.msk [vmem:[#allocation3 + $0x60] sm:$0xf] %vm524, %v907
        %916 = vst.msk [vmem:[#allocation3 + $0x74] sm:$0xf] %vm524, %v908
        %917 = vst.msk [vmem:[#allocation3 + $0x88] sm:$0xf] %vm524, %v909
        %918 = vst.msk [vmem:[#allocation3 + $0x9c] sm:$0xf] %vm524, %v910
        %v919 = vld [vmem:[#allocation3] sm:$0xff]
        %v920 = vld [vmem:[#allocation3 + $0x8] sm:$0xff]
        %v921 = vld [vmem:[#allocation3 + $0x10] sm:$0xf]
        %v922 = vld [vmem:[#allocation3 + $0x14] sm:$0xff]
        %v923 = vld [vmem:[#allocation3 + $0x1c] sm:$0xff]
        %v924 = vld [vmem:[#allocation3 + $0x24] sm:$0xf]
        %v925 = vld [vmem:[#allocation3 + $0x28] sm:$0xff]
        %v926 = vld [vmem:[#allocation3 + $0x30] sm:$0xff]
        %v927 = vld [vmem:[#allocation3 + $0x38] sm:$0xf]
        %v928 = vld [vmem:[#allocation3 + $0x3c] sm:$0xff]
        %v929 = vld [vmem:[#allocation3 + $0x44] sm:$0xff]
        %v930 = vld [vmem:[#allocation3 + $0x4c] sm:$0xf]
        %v931 = vld [vmem:[#allocation3 + $0x50] sm:$0xff]
        %v932 = vld [vmem:[#allocation3 + $0x58] sm:$0xff]
        %v933 = vld [vmem:[#allocation3 + $0x60] sm:$0xf]
        %v934 = vld [vmem:[#allocation3 + $0x64] sm:$0xff]
        %v935 = vld [vmem:[#allocation3 + $0x6c] sm:$0xff]
        %v936 = vld [vmem:[#allocation3 + $0x74] sm:$0xf]
        %v937 = vld [vmem:[#allocation3 + $0x78] sm:$0xff]
        %v938 = vld [vmem:[#allocation3 + $0x80] sm:$0xff]
        %v939 = vld [vmem:[#allocation3 + $0x88] sm:$0xf]
        %v940 = vld [vmem:[#allocation3 + $0x8c] sm:$0xff]
        %v941 = vld [vmem:[#allocation3 + $0x94] sm:$0xff]
        %v942 = vld [vmem:[#allocation3 + $0x9c] sm:$0xf]
        %v943 = vld [vmem:[%s465] sm:$0xff]
        %v944 = vld [vmem:[%s465 + $0x8] sm:$0xff]
        %v945 = vld [vmem:[%s465 + $0x10] sm:$0xff]
        %v946 = vld [vmem:[%s465 + $0x18] sm:$0xff]
        %v947 = vld [vmem:[%s465 + $0x20] sm:$0xff]
        %v948 = vld [vmem:[%s465 + $0x28] sm:$0xff]
        %v949 = vld [vmem:[%s465 + $0x30] sm:$0xff]
        %v950 = vld [vmem:[%s465 + $0x38] sm:$0xff]
        %v951 = vld [vmem:[%s1] sm:$0xf]
        %v952 = vld [vmem:[%s1 + $0x4] sm:$0xf]
        %v953 = vld [vmem:[%s1 + $0x8] sm:$0xf]
        %v954 = vld [vmem:[%s1 + $0xc] sm:$0xf]
        %v955 = vld [vmem:[%s1 + $0x10] sm:$0xf]
        %v956 = vld [vmem:[%s1 + $0x14] sm:$0xf]
        %v957 = vld [vmem:[%s1 + $0x18] sm:$0xf]
        %v958 = vld [vmem:[%s1 + $0x1c] sm:$0xf]
        %v959 = vld [vmem:[%s1 + $0x20] sm:$0xf]
        %v960 = vld [vmem:[%s1 + $0x24] sm:$0xf]
        %v961 = vld [vmem:[%s1 + $0x28] sm:$0xf]
        %v962 = vld [vmem:[%s1 + $0x2c] sm:$0xf]
        %v963 = vld [vmem:[%s1 + $0x30] sm:$0xf]
        %v964 = vld [vmem:[%s1 + $0x34] sm:$0xf]
        %v965 = vld [vmem:[%s1 + $0x38] sm:$0xf]
        %v966 = vld [vmem:[%s1 + $0x3c] sm:$0xf]
        %v967 = vld [vmem:[%s1 + $0x40] sm:$0xf]
        %v968 = vld [vmem:[%s1 + $0x44] sm:$0xf]
        %v969 = vld [vmem:[%s1 + $0x48] sm:$0xf]
        %v970 = vld [vmem:[%s1 + $0x4c] sm:$0xf]
        %v971 = vld [vmem:[%s1 + $0x50] sm:$0xf]
        %v972 = vld [vmem:[%s1 + $0x54] sm:$0xf]
        %v973 = vld [vmem:[%s1 + $0x58] sm:$0xf]
        %v974 = vld [vmem:[%s1 + $0x5c] sm:$0xf]
        %v975 = vld [vmem:[%s1 + $0x60] sm:$0xf]
        %v976 = vld [vmem:[%s1 + $0x64] sm:$0xf]
        %v977 = vld [vmem:[%s1 + $0x68] sm:$0xf]
        %v978 = vld [vmem:[%s1 + $0x6c] sm:$0xf]
        %v979 = vld [vmem:[%s1 + $0x70] sm:$0xf]
        %v980 = vld [vmem:[%s1 + $0x74] sm:$0xf]
        %v981 = vld [vmem:[%s1 + $0x78] sm:$0xf]
        %v982 = vld [vmem:[%s1 + $0x7c] sm:$0xf]
        %v983 = vld [vmem:[%s1 + $0x80] sm:$0xf]
        %v984 = vld [vmem:[%s1 + $0x84] sm:$0xf]
        %v985 = vld [vmem:[%s1 + $0x88] sm:$0xf]
        %v986 = vld [vmem:[%s1 + $0x8c] sm:$0xf]
        %v987 = vld [vmem:[%s1 + $0x90] sm:$0xf]
        %v988 = vld [vmem:[%s1 + $0x94] sm:$0xf]
        %v989 = vld [vmem:[%s1 + $0x98] sm:$0xf]
        %v990 = vld [vmem:[%s1 + $0x9c] sm:$0xf]
        %v991 = vld [vmem:[%s1 + $0xa0] sm:$0xf]
        %v992 = vld [vmem:[%s1 + $0xa4] sm:$0xf]
        %v993 = vld [vmem:[%s1 + $0xa8] sm:$0xf]
        %v994 = vld [vmem:[%s1 + $0xac] sm:$0xf]
        %v995 = vld [vmem:[%s1 + $0xb0] sm:$0xf]
        %v996 = vld [vmem:[%s1 + $0xb4] sm:$0xf]
        %v997 = vld [vmem:[%s1 + $0xb8] sm:$0xf]
        %v998 = vld [vmem:[%s1 + $0xbc] sm:$0xf]
        %v999 = vld [vmem:[%s1 + $0xc0] sm:$0xf]
        %v1000 = vld [vmem:[%s1 + $0xc4] sm:$0xf]
        %v1001 = vld [vmem:[%s1 + $0xc8] sm:$0xf]
        %v1002 = vld [vmem:[%s1 + $0xcc] sm:$0xf]
        %v1003 = vld [vmem:[%s1 + $0xd0] sm:$0xf]
        %v1004 = vld [vmem:[%s1 + $0xd4] sm:$0xf]
        %v1005 = vld [vmem:[%s1 + $0xd8] sm:$0xf]
        %v1006 = vld [vmem:[%s1 + $0xdc] sm:$0xf]
        %v1007 = vld [vmem:[%s1 + $0xe0] sm:$0xf]
        %v1008 = vld [vmem:[%s1 + $0xe4] sm:$0xf]
        %v1009 = vld [vmem:[%s1 + $0xe8] sm:$0xf]
        %v1010 = vld [vmem:[%s1 + $0xec] sm:$0xf]
        %v1011 = vld [vmem:[%s1 + $0xf0] sm:$0xf]
        %v1012 = vld [vmem:[%s1 + $0xf4] sm:$0xf]
        %v1013 = vld [vmem:[%s1 + $0xf8] sm:$0xf]
        %v1014 = vld [vmem:[%s1 + $0xfc] sm:$0xf]
        %v1015 = vld [vmem:[%s1 + $0x100] sm:$0xf]
        %v1016 = vld [vmem:[%s1 + $0x104] sm:$0xf]
        %v1017 = vld [vmem:[%s1 + $0x108] sm:$0xf]
        %v1018 = vld [vmem:[%s1 + $0x10c] sm:$0xf]
        %v1019 = vld [vmem:[%s1 + $0x110] sm:$0xf]
        %v1020 = vld [vmem:[%s1 + $0x114] sm:$0xf]
        %v1021 = vld [vmem:[%s1 + $0x118] sm:$0xf]
        %v1022 = vld [vmem:[%s1 + $0x11c] sm:$0xf]
        %v1023 = vld [vmem:[%s2] sm:$0x1]
        %v1025 = vlaneseq
        %v1026 = vshrl.u32 %v1025, 7
        %v1027 = vsub.s32 0, %v1026
        %v1028 = vrot.slane %v1023, %v1027
        %v1054 = vunpack.c.l.b16 %v919
        %v1055 = vunpack.c.h.b16 %v919
        %v1056 = vunpack.c.l.b16 %v920
        %v1057 = vunpack.c.h.b16 %v920
        %v1058 = vunpack.c.l.b16 %v921
        %v1059 = vunpack.c.l.b16 %v922
        %v1060 = vunpack.c.h.b16 %v922
        %v1061 = vunpack.c.l.b16 %v923
        %v1062 = vunpack.c.h.b16 %v923
        %v1063 = vunpack.c.l.b16 %v924
        %v1064 = vunpack.c.l.b16 %v925
        %v1065 = vunpack.c.h.b16 %v925
        %v1066 = vunpack.c.l.b16 %v926
        %v1067 = vunpack.c.h.b16 %v926
        %v1068 = vunpack.c.l.b16 %v927
        %v1069 = vunpack.c.l.b16 %v928
        %v1070 = vunpack.c.h.b16 %v928
        %v1071 = vunpack.c.l.b16 %v929
        %v1072 = vunpack.c.h.b16 %v929
        %v1073 = vunpack.c.l.b16 %v930
        %v1074 = vunpack.c.l.b16 %v931
        %v1075 = vunpack.c.h.b16 %v931
        %v1076 = vunpack.c.l.b16 %v932
        %v1077 = vunpack.c.h.b16 %v932
        %v1078 = vunpack.c.l.b16 %v933
        %v1079 = vunpack.c.l.b16 %v934
        %v1080 = vunpack.c.h.b16 %v934
        %v1081 = vunpack.c.l.b16 %v935
        %v1082 = vunpack.c.h.b16 %v935
        %v1083 = vunpack.c.l.b16 %v936
        %v1084 = vunpack.c.l.b16 %v937
        %v1085 = vunpack.c.h.b16 %v937
        %v1086 = vunpack.c.l.b16 %v938
        %v1087 = vunpack.c.h.b16 %v938
        %v1088 = vunpack.c.l.b16 %v939
        %v1089 = vunpack.c.l.b16 %v940
        %v1090 = vunpack.c.h.b16 %v940
        %v1091 = vunpack.c.l.b16 %v941
        %v1092 = vunpack.c.h.b16 %v941
        %v1093 = vunpack.c.l.b16 %v942
        %v1094 = vpack.c.b16 %v1059, %v1054
        %v1095 = vpack.c.b16 %v1060, %v1055
        %v1096 = vpack.c.b16 %v1061, %v1056
        %v1097 = vpack.c.b16 %v1062, %v1057
        %v1098 = vpack.c.b16 %v1063, %v1058
        %v1099 = vpack.c.b16 %v1069, %v1064
        %v1100 = vpack.c.b16 %v1070, %v1065
        %v1101 = vpack.c.b16 %v1071, %v1066
        %v1102 = vpack.c.b16 %v1072, %v1067
        %v1103 = vpack.c.b16 %v1073, %v1068
        %v1104 = vpack.c.b16 %v1079, %v1074
        %v1105 = vpack.c.b16 %v1080, %v1075
        %v1106 = vpack.c.b16 %v1081, %v1076
        %v1107 = vpack.c.b16 %v1082, %v1077
        %v1108 = vpack.c.b16 %v1083, %v1078
        %v1109 = vpack.c.b16 %v1089, %v1084
        %v1110 = vpack.c.b16 %v1090, %v1085
        %v1111 = vpack.c.b16 %v1091, %v1086
        %v1112 = vpack.c.b16 %v1092, %v1087
        %v1113 = vpack.c.b16 %v1093, %v1088
        %v1202 = vunpack.c.l.b16 %v951
        %v1203 = vunpack.c.l.b16 %v952
        %v1204 = vunpack.c.l.b16 %v953
        %v1205 = vunpack.c.l.b16 %v954
        %v1206 = vunpack.c.l.b16 %v955
        %v1207 = vunpack.c.l.b16 %v956
        %v1208 = vunpack.c.l.b16 %v957
        %v1209 = vunpack.c.l.b16 %v958
        %v1210 = vunpack.c.l.b16 %v959
        %v1211 = vunpack.c.l.b16 %v960
        %v1212 = vunpack.c.l.b16 %v961
        %v1213 = vunpack.c.l.b16 %v962
        %v1214 = vunpack.c.l.b16 %v963
        %v1215 = vunpack.c.l.b16 %v964
        %v1216 = vunpack.c.l.b16 %v965
        %v1217 = vunpack.c.l.b16 %v966
        %v1218 = vunpack.c.l.b16 %v967
        %v1219 = vunpack.c.l.b16 %v968
        %v1220 = vunpack.c.l.b16 %v969
        %v1221 = vunpack.c.l.b16 %v970
        %v1222 = vunpack.c.l.b16 %v971
        %v1223 = vunpack.c.l.b16 %v972
        %v1224 = vunpack.c.l.b16 %v973
        %v1225 = vunpack.c.l.b16 %v974
        %v1226 = vunpack.c.l.b16 %v975
        %v1227 = vunpack.c.l.b16 %v976
        %v1228 = vunpack.c.l.b16 %v977
        %v1229 = vunpack.c.l.b16 %v978
        %v1230 = vunpack.c.l.b16 %v979
        %v1231 = vunpack.c.l.b16 %v980
        %v1232 = vunpack.c.l.b16 %v981
        %v1233 = vunpack.c.l.b16 %v982
        %v1234 = vunpack.c.l.b16 %v983
        %v1235 = vunpack.c.l.b16 %v984
        %v1236 = vunpack.c.l.b16 %v985
        %v1237 = vunpack.c.l.b16 %v986
        %v1238 = vunpack.c.l.b16 %v987
        %v1239 = vunpack.c.l.b16 %v988
        %v1240 = vunpack.c.l.b16 %v989
        %v1241 = vunpack.c.l.b16 %v990
        %v1242 = vunpack.c.l.b16 %v991
        %v1243 = vunpack.c.l.b16 %v992
        %v1244 = vunpack.c.l.b16 %v993
        %v1245 = vunpack.c.l.b16 %v994
        %v1246 = vunpack.c.l.b16 %v995
        %v1247 = vunpack.c.l.b16 %v996
        %v1248 = vunpack.c.l.b16 %v997
        %v1249 = vunpack.c.l.b16 %v998
        %v1250 = vunpack.c.l.b16 %v999
        %v1251 = vunpack.c.l.b16 %v1000
        %v1252 = vunpack.c.l.b16 %v1001
        %v1253 = vunpack.c.l.b16 %v1002
        %v1254 = vunpack.c.l.b16 %v1003
        %v1255 = vunpack.c.l.b16 %v1004
        %v1256 = vunpack.c.l.b16 %v1005
        %v1257 = vunpack.c.l.b16 %v1006
        %v1258 = vunpack.c.l.b16 %v1007
        %v1259 = vunpack.c.l.b16 %v1008
        %v1260 = vunpack.c.l.b16 %v1009
        %v1261 = vunpack.c.l.b16 %v1010
        %v1262 = vunpack.c.l.b16 %v1011
        %v1263 = vunpack.c.l.b16 %v1012
        %v1264 = vunpack.c.l.b16 %v1013
        %v1265 = vunpack.c.l.b16 %v1014
        %v1266 = vunpack.c.l.b16 %v1015
        %v1267 = vunpack.c.l.b16 %v1016
        %v1268 = vunpack.c.l.b16 %v1017
        %v1269 = vunpack.c.l.b16 %v1018
        %v1270 = vunpack.c.l.b16 %v1019
        %v1271 = vunpack.c.l.b16 %v1020
        %v1272 = vunpack.c.l.b16 %v1021
        %v1273 = vunpack.c.l.b16 %v1022
        %v1274 = vpack.c.b16 %v1203, %v1202
        %v1275 = vpack.c.b16 %v1205, %v1204
        %v1276 = vpack.c.b16 %v1207, %v1206
        %v1277 = vpack.c.b16 %v1209, %v1208
        %v1278 = vpack.c.b16 %v1211, %v1210
        %v1279 = vpack.c.b16 %v1213, %v1212
        %v1280 = vpack.c.b16 %v1215, %v1214
        %v1281 = vpack.c.b16 %v1217, %v1216
        %v1282 = vpack.c.b16 %v1219, %v1218
        %v1283 = vpack.c.b16 %v1221, %v1220
        %v1284 = vpack.c.b16 %v1223, %v1222
        %v1285 = vpack.c.b16 %v1225, %v1224
        %v1286 = vpack.c.b16 %v1227, %v1226
        %v1287 = vpack.c.b16 %v1229, %v1228
        %v1288 = vpack.c.b16 %v1231, %v1230
        %v1289 = vpack.c.b16 %v1233, %v1232
        %v1290 = vpack.c.b16 %v1235, %v1234
        %v1291 = vpack.c.b16 %v1237, %v1236
        %v1292 = vpack.c.b16 %v1239, %v1238
        %v1293 = vpack.c.b16 %v1241, %v1240
        %v1294 = vpack.c.b16 %v1243, %v1242
        %v1295 = vpack.c.b16 %v1245, %v1244
        %v1296 = vpack.c.b16 %v1247, %v1246
        %v1297 = vpack.c.b16 %v1249, %v1248
        %v1298 = vpack.c.b16 %v1251, %v1250
        %v1299 = vpack.c.b16 %v1253, %v1252
        %v1300 = vpack.c.b16 %v1255, %v1254
        %v1301 = vpack.c.b16 %v1257, %v1256
        %v1302 = vpack.c.b16 %v1259, %v1258
        %v1303 = vpack.c.b16 %v1261, %v1260
        %v1304 = vpack.c.b16 %v1263, %v1262
        %v1305 = vpack.c.b16 %v1265, %v1264
        %v1306 = vpack.c.b16 %v1267, %v1266
        %v1307 = vpack.c.b16 %v1269, %v1268
        %v1308 = vpack.c.b16 %v1271, %v1270
        %v1309 = vpack.c.b16 %v1273, %v1272
        %v1347 = vsel %vm467, %v1098, 0
        %v1350 = vsel %vm467, %v1103, 0
        %v1353 = vsel %vm467, %v1108, 0
        %v1356 = vsel %vm467, %v1113, 0
        %1358 = vmatprep.subr.bf16.mxu0 0
        %1359 = vmatpush1.bf16.msra.mxu0 %v1274
        %1360 = vmatprep.subr.bf16.mxu0 0
        %1361 = vmatpush1.bf16.msra.mxu0 %v1275
        %1362 = vmatprep.subr.bf16.mxu0 0
        %1363 = vmatpush1.bf16.msra.mxu0 %v1276
        %1364 = vmatprep.subr.bf16.mxu0 0
        %1365 = vmatpush1.bf16.msra.mxu0 %v1277
        %1366 = vmatprep.subr.bf16.mxu0 0
        %1367 = vmatpush1.bf16.msra.mxu0 %v1278
        %1368 = vmatprep.subr.bf16.mxu0 0
        %1369 = vmatpush1.bf16.msra.mxu0 %v1279
        %1370 = vmatprep.subr.bf16.mxu0 0
        %1371 = vmatpush1.bf16.msra.mxu0 %v1280
        %1372 = vmatprep.subr.bf16.mxu0 0
        %1373 = vmatpush1.bf16.msra.mxu0 %v1281
        %1374 = vmatprep.subr.bf16.mxu0 0
        %1375 = vmatpush1.bf16.msra.mxu0 %v1282
        %1376 = vmatprep.subr.bf16.mxu0 0
        %1377 = vmatpush1.bf16.msra.mxu0 %v1283
        %1378 = vmatprep.subr.bf16.mxu0 0
        %1379 = vmatpush1.bf16.msra.mxu0 %v1284
        %1380 = vmatprep.subr.bf16.mxu0 0
        %1381 = vmatpush1.bf16.msra.mxu0 %v1285
        %1382 = vmatprep.subr.bf16.mxu0 0
        %1383 = vmatpush1.bf16.msra.mxu0 %v1286
        %1384 = vmatprep.subr.bf16.mxu0 0
        %1385 = vmatpush1.bf16.msra.mxu0 %v1287
        %1386 = vmatprep.subr.bf16.mxu0 0
        %1387 = vmatpush1.bf16.msra.mxu0 %v1288
        %1388 = vmatprep.subr.bf16.mxu0 0
        %1389 = vmatpush1.bf16.msra.mxu0 %v1289
        %1390 = vmatprep.mubr.bf16.mxu0 %v1095
        %1391 = vmatmul.mubr.bf16.gmra.mrb[0].mxu0 %v1094
        %v1392 = vpop.f32.mrb[0].mxu0
        %v1393 = vadd.f32 %v1028, %v1392
        %v1394 = vpop.f32.mrb[0].mxu0
        %v1395 = vpop.f32.mrb[0].mxu0
        %v1396 = vadd.f32 %v1028, %v1395
        %v1397 = vpop.f32.mrb[0].mxu0
        %1398 = vmatprep.mubr.bf16.mxu0 %v1100
        %1399 = vmatmul.mubr.bf16.gmra.mrb[0].mxu0 %v1099
        %v1400 = vpop.f32.mrb[0].mxu0
        %v1401 = vadd.f32 %v1028, %v1400
        %v1402 = vpop.f32.mrb[0].mxu0
        %v1403 = vpop.f32.mrb[0].mxu0
        %v1404 = vadd.f32 %v1028, %v1403
        %v1405 = vpop.f32.mrb[0].mxu0
        %1406 = vmatprep.mubr.bf16.mxu0 %v1105
        %1407 = vmatmul.mubr.bf16.gmra.mrb[0].mxu0 %v1104
        %v1408 = vpop.f32.mrb[0].mxu0
        %v1409 = vadd.f32 %v1028, %v1408
        %v1410 = vpop.f32.mrb[0].mxu0
        %v1411 = vpop.f32.mrb[0].mxu0
        %v1412 = vadd.f32 %v1028, %v1411
        %v1413 = vpop.f32.mrb[0].mxu0
        %1414 = vmatprep.mubr.bf16.mxu0 %v1110
        %1415 = vmatmul.mubr.bf16.gmra.mrb[0].mxu0 %v1109
        %v1416 = vpop.f32.mrb[0].mxu0
        %v1417 = vadd.f32 %v1028, %v1416
        %v1418 = vpop.f32.mrb[0].mxu0
        %v1419 = vpop.f32.mrb[0].mxu0
        %v1420 = vadd.f32 %v1028, %v1419
        %v1421 = vpop.f32.mrb[0].mxu0
        %1422 = vdwg.mxu0
        %1423 = vmatprep.subr.bf16.mxu0 0
        %1424 = vmatpush1.bf16.msra.mxu0 %v1290
        %1425 = vmatprep.subr.bf16.mxu0 0
        %1426 = vmatpush1.bf16.msra.mxu0 %v1291
        %1427 = vmatprep.subr.bf16.mxu0 0
        %1428 = vmatpush1.bf16.msra.mxu0 %v1292
        %1429 = vmatprep.subr.bf16.mxu0 0
        %1430 = vmatpush1.bf16.msra.mxu0 %v1293
        %1431 = vmatprep.subr.bf16.mxu0 0
        %1432 = vmatpush1.bf16.msra.mxu0 %v1294
        %1433 = vmatprep.subr.bf16.mxu0 0
        %1434 = vmatpush1.bf16.msra.mxu0 %v1295
        %1435 = vmatprep.subr.bf16.mxu0 0
        %1436 = vmatpush1.bf16.msra.mxu0 %v1296
        %1437 = vmatprep.subr.bf16.mxu0 0
        %1438 = vmatpush1.bf16.msra.mxu0 %v1297
        %1439 = vmatprep.subr.bf16.mxu0 0
        %1440 = vmatpush1.bf16.msra.mxu0 %v1298
        %1441 = vmatprep.subr.bf16.mxu0 0
        %1442 = vmatpush1.bf16.msra.mxu0 %v1299
        %1443 = vmatprep.subr.bf16.mxu0 0
        %1444 = vmatpush1.bf16.msra.mxu0 %v1300
        %1445 = vmatprep.subr.bf16.mxu0 0
        %1446 = vmatpush1.bf16.msra.mxu0 %v1301
        %1447 = vmatprep.subr.bf16.mxu0 0
        %1448 = vmatpush1.bf16.msra.mxu0 %v1302
        %1449 = vmatprep.subr.bf16.mxu0 0
        %1450 = vmatpush1.bf16.msra.mxu0 %v1303
        %1451 = vmatprep.subr.bf16.mxu0 0
        %1452 = vmatpush1.bf16.msra.mxu0 %v1304
        %1453 = vmatprep.subr.bf16.mxu0 0
        %1454 = vmatpush1.bf16.msra.mxu0 %v1305
        %1455 = vmatprep.mubr.bf16.mxu0 %v1097
        %1456 = vmatmul.mubr.bf16.gmra.mrb[0].mxu0 %v1096
        %v1457 = vpop.f32.mrb[0].mxu0
        %v1458 = vadd.f32 %v1393, %v1457
        %v1459 = vpop.f32.mrb[0].mxu0
        %v1460 = vpop.f32.mrb[0].mxu0
        %v1461 = vadd.f32 %v1396, %v1460
        %v1462 = vpop.f32.mrb[0].mxu0
        %1463 = vmatprep.mubr.bf16.mxu0 %v1102
        %1464 = vmatmul.mubr.bf16.gmra.mrb[0].mxu0 %v1101
        %v1465 = vpop.f32.mrb[0].mxu0
        %v1466 = vadd.f32 %v1401, %v1465
        %v1467 = vpop.f32.mrb[0].mxu0
        %v1468 = vpop.f32.mrb[0].mxu0
        %v1469 = vadd.f32 %v1404, %v1468
        %v1470 = vpop.f32.mrb[0].mxu0
        %1471 = vmatprep.mubr.bf16.mxu0 %v1107
        %1472 = vmatmul.mubr.bf16.gmra.mrb[0].mxu0 %v1106
        %v1473 = vpop.f32.mrb[0].mxu0
        %v1474 = vadd.f32 %v1409, %v1473
        %v1475 = vpop.f32.mrb[0].mxu0
        %v1476 = vpop.f32.mrb[0].mxu0
        %v1477 = vadd.f32 %v1412, %v1476
        %v1478 = vpop.f32.mrb[0].mxu0
        %1479 = vmatprep.mubr.bf16.mxu0 %v1112
        %1480 = vmatmul.mubr.bf16.gmra.mrb[0].mxu0 %v1111
        %v1481 = vpop.f32.mrb[0].mxu0
        %v1482 = vadd.f32 %v1417, %v1481
        %v1483 = vpop.f32.mrb[0].mxu0
        %v1484 = vpop.f32.mrb[0].mxu0
        %v1485 = vadd.f32 %v1420, %v1484
        %v1486 = vpop.f32.mrb[0].mxu0
        %1487 = vdwg.mxu0
        %1488 = vmatprep.subr.bf16.mxu0 0
        %1489 = vmatpush1.bf16.msra.mxu0 %v1306
        %1490 = vmatprep.subr.bf16.mxu0 0
        %1491 = vmatpush1.bf16.msra.mxu0 %v1307
        %1492 = vmatprep.subr.bf16.mxu0 0
        %1493 = vmatpush1.bf16.msra.mxu0 %v1308
        %1494 = vmatprep.subr.bf16.mxu0 0
        %1495 = vmatpush1.bf16.msra.mxu0 %v1309
        %1496 = vmatprep.subr.bf16.mxu0 0
        %1497 = vmatpush1.bf16.msra.mxu0 0
        %1498 = vmatprep.subr.bf16.mxu0 0
        %1499 = vmatpush1.bf16.msra.mxu0 0
        %1500 = vmatprep.subr.bf16.mxu0 0
        %1501 = vmatpush1.bf16.msra.mxu0 0
        %1502 = vmatprep.subr.bf16.mxu0 0
        %1503 = vmatpush1.bf16.msra.mxu0 0
        %1504 = vmatprep.subr.bf16.mxu0 0
        %1505 = vmatpush1.bf16.msra.mxu0 0
        %1506 = vmatprep.subr.bf16.mxu0 0
        %1507 = vmatpush1.bf16.msra.mxu0 0
        %1508 = vmatprep.subr.bf16.mxu0 0
        %1509 = vmatpush1.bf16.msra.mxu0 0
        %1510 = vmatprep.subr.bf16.mxu0 0
        %1511 = vmatpush1.bf16.msra.mxu0 0
        %1512 = vmatprep.subr.bf16.mxu0 0
        %1513 = vmatpush1.bf16.msra.mxu0 0
        %1514 = vmatprep.subr.bf16.mxu0 0
        %1515 = vmatpush1.bf16.msra.mxu0 0
        %1516 = vmatprep.subr.bf16.mxu0 0
        %1517 = vmatpush1.bf16.msra.mxu0 0
        %1518 = vmatprep.subr.bf16.mxu0 0
        %1519 = vmatpush1.bf16.msra.mxu0 0
        %1520 = vmatprep.mubr.bf16.mxu0 0
        %1521 = vmatmul.mubr.bf16.gmra.mrb[0].mxu0 %v1347
        %v1522 = vpop.f32.mrb[0].mxu0
        %v1523 = vadd.f32 %v1458, %v1522
        %v1524 = vpop.f32.mrb[0].mxu0
        %v1525 = vpop.f32.mrb[0].mxu0
        %v1526 = vadd.f32 %v1461, %v1525
        %v1527 = vpop.f32.mrb[0].mxu0
        %1528 = vmatprep.mubr.bf16.mxu0 0
        %1529 = vmatmul.mubr.bf16.gmra.mrb[0].mxu0 %v1350
        %v1530 = vpop.f32.mrb[0].mxu0
        %v1531 = vadd.f32 %v1466, %v1530
        %v1532 = vpop.f32.mrb[0].mxu0
        %v1533 = vpop.f32.mrb[0].mxu0
        %v1534 = vadd.f32 %v1469, %v1533
        %v1535 = vpop.f32.mrb[0].mxu0
        %1536 = vmatprep.mubr.bf16.mxu0 0
        %1537 = vmatmul.mubr.bf16.gmra.mrb[0].mxu0 %v1353
        %v1538 = vpop.f32.mrb[0].mxu0
        %v1539 = vadd.f32 %v1474, %v1538
        %v1540 = vpop.f32.mrb[0].mxu0
        %v1541 = vpop.f32.mrb[0].mxu0
        %v1542 = vadd.f32 %v1477, %v1541
        %v1543 = vpop.f32.mrb[0].mxu0
        %1544 = vmatprep.mubr.bf16.mxu0 0
        %1545 = vmatmul.mubr.bf16.gmra.mrb[0].mxu0 %v1356
        %v1546 = vpop.f32.mrb[0].mxu0
        %v1547 = vadd.f32 %v1482, %v1546
        %v1548 = vpop.f32.mrb[0].mxu0
        %v1549 = vpop.f32.mrb[0].mxu0
        %v1550 = vadd.f32 %v1485, %v1549
        %v1551 = vpop.f32.mrb[0].mxu0
        %1552 = vdwg.mxu0
        %v1553 = vld [vmem:[%s3] sm:$0x1]
        %v1554 = vld [vmem:[%s4] sm:$0x1]
        %v1555 = vsel %vm467, %v1523, 0.0
        %1556 = vadd.xlane.f32.xlu0 %v1555
        %v1557 = vpop.xlane.xlu0 %1556
        %v1558 = vsel %vm467, %v1526, 0.0
        %1559 = vadd.xlane.f32.xlu0 %v1558
        %v1560 = vpop.xlane.xlu0 %1559
        %v1561 = vsel %vm467, %v1531, 0.0
        %1562 = vadd.xlane.f32.xlu0 %v1561
        %v1563 = vpop.xlane.xlu0 %1562
        %v1564 = vsel %vm467, %v1534, 0.0
        %1565 = vadd.xlane.f32.xlu0 %v1564
        %v1566 = vpop.xlane.xlu0 %1565
        %v1567 = vsel %vm467, %v1539, 0.0
        %1568 = vadd.xlane.f32.xlu0 %v1567
        %v1569 = vpop.xlane.xlu0 %1568
        %v1570 = vsel %vm467, %v1542, 0.0
        %1571 = vadd.xlane.f32.xlu0 %v1570
        %v1572 = vpop.xlane.xlu0 %1571
        %v1573 = vsel %vm467, %v1547, 0.0
        %1574 = vadd.xlane.f32.xlu0 %v1573
        %v1575 = vpop.xlane.xlu0 %1574
        %v1576 = vsel %vm467, %v1550, 0.0
        %1577 = vadd.xlane.f32.xlu0 %v1576
        %v1578 = vpop.xlane.xlu0 %1577
        %v1579 = vrcp.pop 64.0
        %v1580 = vmul.f32 %v1557, %v1579
        %v1581 = vmul.f32 %v1560, %v1579
        %v1582 = vmul.f32 %v1563, %v1579
        %v1583 = vmul.f32 %v1566, %v1579
        %v1584 = vmul.f32 %v1569, %v1579
        %v1585 = vmul.f32 %v1572, %v1579
        %v1586 = vmul.f32 %v1575, %v1579
        %v1587 = vmul.f32 %v1578, %v1579
        %v1588 = vsub.f32 %v1523, %v1580
        %v1589 = vsub.f32 %v1526, %v1581
        %v1590 = vsub.f32 %v1531, %v1582
        %v1591 = vsub.f32 %v1534, %v1583
        %v1592 = vsub.f32 %v1539, %v1584
        %v1593 = vsub.f32 %v1542, %v1585
        %v1594 = vsub.f32 %v1547, %v1586
        %v1595 = vsub.f32 %v1550, %v1587
        %v1596 = vmul.f32 %v1588, %v1588
        %v1597 = vmul.f32 %v1589, %v1589
        %v1598 = vmul.f32 %v1590, %v1590
        %v1599 = vmul.f32 %v1591, %v1591
        %v1600 = vmul.f32 %v1592, %v1592
        %v1601 = vmul.f32 %v1593, %v1593
        %v1602 = vmul.f32 %v1594, %v1594
        %v1603 = vmul.f32 %v1595, %v1595
        %v1604 = vsel %vm467, %v1596, 0.0
        %1605 = vadd.xlane.f32.xlu0 %v1604
        %v1606 = vpop.xlane.xlu0 %1605
        %v1607 = vsel %vm467, %v1597, 0.0
        %1608 = vadd.xlane.f32.xlu0 %v1607
        %v1609 = vpop.xlane.xlu0 %1608
        %v1610 = vsel %vm467, %v1598, 0.0
        %1611 = vadd.xlane.f32.xlu0 %v1610
        %v1612 = vpop.xlane.xlu0 %1611
        %v1613 = vsel %vm467, %v1599, 0.0
        %1614 = vadd.xlane.f32.xlu0 %v1613
        %v1615 = vpop.xlane.xlu0 %1614
        %v1616 = vsel %vm467, %v1600, 0.0
        %1617 = vadd.xlane.f32.xlu0 %v1616
        %v1618 = vpop.xlane.xlu0 %1617
        %v1619 = vsel %vm467, %v1601, 0.0
        %1620 = vadd.xlane.f32.xlu0 %v1619
        %v1621 = vpop.xlane.xlu0 %1620
        %v1622 = vsel %vm467, %v1602, 0.0
        %1623 = vadd.xlane.f32.xlu0 %v1622
        %v1624 = vpop.xlane.xlu0 %1623
        %v1625 = vsel %vm467, %v1603, 0.0
        %1626 = vadd.xlane.f32.xlu0 %v1625
        %v1627 = vpop.xlane.xlu0 %1626
        %v1628 = vmul.f32 %v1606, %v1579
        %v1629 = vmul.f32 %v1609, %v1579
        %v1630 = vmul.f32 %v1612, %v1579
        %v1631 = vmul.f32 %v1615, %v1579
        %v1632 = vmul.f32 %v1618, %v1579
        %v1633 = vmul.f32 %v1621, %v1579
        %v1634 = vmul.f32 %v1624, %v1579
        %v1635 = vmul.f32 %v1627, %v1579
        %v1636 = vadd.f32 %v1628, 1e-06
        %v1637 = vadd.f32 %v1629, 1e-06
        %v1638 = vadd.f32 %v1630, 1e-06
        %v1639 = vadd.f32 %v1631, 1e-06
        %v1640 = vadd.f32 %v1632, 1e-06
        %v1641 = vadd.f32 %v1633, 1e-06
        %v1642 = vadd.f32 %v1634, 1e-06
        %v1643 = vadd.f32 %v1635, 1e-06
        %v1644 = vrsqrt.pop %v1636
        %v1645 = vrsqrt.pop %v1637
        %v1646 = vrsqrt.pop %v1638
        %v1647 = vrsqrt.pop %v1639
        %v1648 = vrsqrt.pop %v1640
        %v1649 = vrsqrt.pop %v1641
        %v1650 = vrsqrt.pop %v1642
        %v1651 = vrsqrt.pop %v1643
        %v1652 = vmul.f32 %v1588, %v1644
        %v1653 = vmul.f32 %v1589, %v1645
        %v1654 = vmul.f32 %v1590, %v1646
        %v1655 = vmul.f32 %v1591, %v1647
        %v1656 = vmul.f32 %v1592, %v1648
        %v1657 = vmul.f32 %v1593, %v1649
        %v1658 = vmul.f32 %v1594, %v1650
        %v1659 = vmul.f32 %v1595, %v1651
        %v1661 = vlaneseq
        %v1662 = vshrl.u32 %v1661, 7
        %v1663 = vsub.s32 0, %v1662
        %v1664 = vrot.slane %v1553, %v1663
        %v1666 = vmul.f32 %v1652, %v1664
        %v1667 = vmul.f32 %v1653, %v1664
        %v1668 = vmul.f32 %v1654, %v1664
        %v1669 = vmul.f32 %v1655, %v1664
        %v1670 = vmul.f32 %v1656, %v1664
        %v1671 = vmul.f32 %v1657, %v1664
        %v1672 = vmul.f32 %v1658, %v1664
        %v1673 = vmul.f32 %v1659, %v1664
        %v1675 = vlaneseq
        %v1676 = vshrl.u32 %v1675, 7
        %v1677 = vsub.s32 0, %v1676
        %v1678 = vrot.slane %v1554, %v1677
        %v1680 = vadd.f32 %v1666, %v1678
        %v1681 = vadd.f32 %v1667, %v1678
        %v1682 = vadd.f32 %v1668, %v1678
        %v1683 = vadd.f32 %v1669, %v1678
        %v1684 = vadd.f32 %v1670, %v1678
        %v1685 = vadd.f32 %v1671, %v1678
        %v1686 = vadd.f32 %v1672, %v1678
        %v1687 = vadd.f32 %v1673, %v1678
        %v1688 = vmul.f32 %v1680, %v1680
        %v1689 = vmul.f32 %v1681, %v1681
        %v1690 = vmul.f32 %v1682, %v1682
        %v1691 = vmul.f32 %v1683, %v1683
        %v1692 = vmul.f32 %v1684, %v1684
        %v1693 = vmul.f32 %v1685, %v1685
        %v1694 = vmul.f32 %v1686, %v1686
        %v1695 = vmul.f32 %v1687, %v1687
        %v1696 = vmul.f32 %v1680, %v1688
        %v1697 = vmul.f32 %v1681, %v1689
        %v1698 = vmul.f32 %v1682, %v1690
        %v1699 = vmul.f32 %v1683, %v1691
        %v1700 = vmul.f32 %v1684, %v1692
        %v1701 = vmul.f32 %v1685, %v1693
        %v1702 = vmul.f32 %v1686, %v1694
        %v1703 = vmul.f32 %v1687, %v1695
        %v1704 = vmul.f32 %v1696, 0.044715
        %v1705 = vmul.f32 %v1697, 0.044715
        %v1706 = vmul.f32 %v1698, 0.044715
        %v1707 = vmul.f32 %v1699, 0.044715
        %v1708 = vmul.f32 %v1700, 0.044715
        %v1709 = vmul.f32 %v1701, 0.044715
        %v1710 = vmul.f32 %v1702, 0.044715
        %v1711 = vmul.f32 %v1703, 0.044715
        %v1712 = vadd.f32 %v1680, %v1704
        %v1713 = vadd.f32 %v1681, %v1705
        %v1714 = vadd.f32 %v1682, %v1706
        %v1715 = vadd.f32 %v1683, %v1707
        %v1716 = vadd.f32 %v1684, %v1708
        %v1717 = vadd.f32 %v1685, %v1709
        %v1718 = vadd.f32 %v1686, %v1710
        %v1719 = vadd.f32 %v1687, %v1711
        %v1720 = vmul.f32 %v1712, 0.7978846
        %v1721 = vmul.f32 %v1713, 0.7978846
        %v1722 = vmul.f32 %v1714, 0.7978846
        %v1723 = vmul.f32 %v1715, 0.7978846
        %v1724 = vmul.f32 %v1716, 0.7978846
        %v1725 = vmul.f32 %v1717, 0.7978846
        %v1726 = vmul.f32 %v1718, 0.7978846
        %v1727 = vmul.f32 %v1719, 0.7978846
        %v1728 = vtanh.pop %v1720
        %v1729 = vtanh.pop %v1721
        %v1730 = vtanh.pop %v1722
        %v1731 = vtanh.pop %v1723
        %v1732 = vtanh.pop %v1724
        %v1733 = vtanh.pop %v1725
        %v1734 = vtanh.pop %v1726
        %v1735 = vtanh.pop %v1727
        %v1736 = vadd.f32 %v1728, 1.0
        %v1737 = vadd.f32 %v1729, 1.0
        %v1738 = vadd.f32 %v1730, 1.0
        %v1739 = vadd.f32 %v1731, 1.0
        %v1740 = vadd.f32 %v1732, 1.0
        %v1741 = vadd.f32 %v1733, 1.0
        %v1742 = vadd.f32 %v1734, 1.0
        %v1743 = vadd.f32 %v1735, 1.0
        %v1744 = vmul.f32 %v1736, 0.5
        %v1745 = vmul.f32 %v1737, 0.5
        %v1746 = vmul.f32 %v1738, 0.5
        %v1747 = vmul.f32 %v1739, 0.5
        %v1748 = vmul.f32 %v1740, 0.5
        %v1749 = vmul.f32 %v1741, 0.5
        %v1750 = vmul.f32 %v1742, 0.5
        %v1751 = vmul.f32 %v1743, 0.5
        %v1752 = vmul.f32 %v1680, %v1744
        %v1753 = vmul.f32 %v1681, %v1745
        %v1754 = vmul.f32 %v1682, %v1746
        %v1755 = vmul.f32 %v1683, %v1747
        %v1756 = vmul.f32 %v1684, %v1748
        %v1757 = vmul.f32 %v1685, %v1749
        %v1758 = vmul.f32 %v1686, %v1750
        %v1759 = vmul.f32 %v1687, %v1751
        %v1760 = vsel %vm467, %v1752, 0.0
        %v1761 = vsel %vm467, %v1753, 0.0
        %v1762 = vadd.f32 %v1760, %v1761
        %v1763 = vsel %vm467, %v1754, 0.0
        %v1764 = vadd.f32 %v1762, %v1763
        %v1765 = vsel %vm467, %v1755, 0.0
        %v1766 = vadd.f32 %v1764, %v1765
        %v1767 = vsel %vm467, %v1756, 0.0
        %v1768 = vadd.f32 %v1766, %v1767
        %v1769 = vsel %vm467, %v1757, 0.0
        %v1770 = vadd.f32 %v1768, %v1769
        %v1771 = vsel %vm467, %v1758, 0.0
        %v1772 = vadd.f32 %v1770, %v1771
        %v1773 = vsel %vm467, %v1759, 0.0
        %v1774 = vadd.f32 %v1772, %v1773
        %v1775 = vrot.slane %v1774, 4
        %v1776 = vadd.f32 %v1774, %v1775
        %v1777 = vrot.slane %v1776, 2
        %v1778 = vadd.f32 %v1776, %v1777
        %v1779 = vrot.slane %v1778, 1
        %v1780 = vadd.f32 %v1778, %v1779
        %v1781 = vmul.f32 %v1780, 0.015625
        %v1782 = vpack.c.bf16 %v1781, %v1781
        %v1783 = vld [vmem:[%s5] sm:$0xf]
        %v1784 = vld [vmem:[%s5 + $0x4] sm:$0xf]
        %v1785 = vld [vmem:[%s5 + $0x8] sm:$0xf]
        %v1786 = vld [vmem:[%s5 + $0xc] sm:$0xf]
        %v1787 = vld [vmem:[%s5 + $0x10] sm:$0xf]
        %v1788 = vld [vmem:[%s5 + $0x14] sm:$0xf]
        %v1789 = vld [vmem:[%s5 + $0x18] sm:$0xf]
        %v1790 = vld [vmem:[%s5 + $0x1c] sm:$0xf]
        %v1791 = vld [vmem:[%s6] sm:$0x1]
        %v1800 = vunpack.c.l.b16 %v1783
        %v1801 = vunpack.c.l.b16 %v1784
        %v1802 = vunpack.c.l.b16 %v1785
        %v1803 = vunpack.c.l.b16 %v1786
        %v1804 = vunpack.c.l.b16 %v1787
        %v1805 = vunpack.c.l.b16 %v1788
        %v1806 = vunpack.c.l.b16 %v1789
        %v1807 = vunpack.c.l.b16 %v1790
        %v1808 = vpack.c.b16 %v1801, %v1800
        %v1809 = vpack.c.b16 %v1803, %v1802
        %v1810 = vpack.c.b16 %v1805, %v1804
        %v1811 = vpack.c.b16 %v1807, %v1806
        %v1817 = vsel %vm467, %v1782, 0
        %1819 = vmatprep.subr.bf16.mxu0 0
        %1820 = vmatpush1.bf16.msra.mxu0 %v1808
        %1821 = vmatprep.subr.bf16.mxu0 0
        %1822 = vmatpush1.bf16.msra.mxu0 %v1809
        %1823 = vmatprep.subr.bf16.mxu0 0
        %1824 = vmatpush1.bf16.msra.mxu0 %v1810
        %1825 = vmatprep.subr.bf16.mxu0 0
        %1826 = vmatpush1.bf16.msra.mxu0 %v1811
        %1827 = vmatprep.subr.bf16.mxu0 0
        %1828 = vmatpush1.bf16.msra.mxu0 0
        %1829 = vmatprep.subr.bf16.mxu0 0
        %1830 = vmatpush1.bf16.msra.mxu0 0
        %1831 = vmatprep.subr.bf16.mxu0 0
        %1832 = vmatpush1.bf16.msra.mxu0 0
        %1833 = vmatprep.subr.bf16.mxu0 0
        %1834 = vmatpush1.bf16.msra.mxu0 0
        %1835 = vmatprep.subr.bf16.mxu0 0
        %1836 = vmatpush1.bf16.msra.mxu0 0
        %1837 = vmatprep.subr.bf16.mxu0 0
        %1838 = vmatpush1.bf16.msra.mxu0 0
        %1839 = vmatprep.subr.bf16.mxu0 0
        %1840 = vmatpush1.bf16.msra.mxu0 0
        %1841 = vmatprep.subr.bf16.mxu0 0
        %1842 = vmatpush1.bf16.msra.mxu0 0
        %1843 = vmatprep.subr.bf16.mxu0 0
        %1844 = vmatpush1.bf16.msra.mxu0 0
        %1845 = vmatprep.subr.bf16.mxu0 0
        %1846 = vmatpush1.bf16.msra.mxu0 0
        %1847 = vmatprep.subr.bf16.mxu0 0
        %1848 = vmatpush1.bf16.msra.mxu0 0
        %1849 = vmatprep.subr.bf16.mxu0 0
        %1850 = vmatpush1.bf16.msra.mxu0 0
        %1851 = vmatprep.mubr.bf16.mxu0 0
        %1852 = vmatmul.mubr.bf16.gmra.mrb[0].mxu0 %v1817
        %v1853 = vpop.f32.mrb[0].mxu0
        %v1854 = vadd.f32 %v1791, %v1853
        %v1855 = vpop.f32.mrb[0].mxu0
        %v1856 = vpop.f32.mrb[0].mxu0
        %v1857 = vpop.f32.mrb[0].mxu0
        %1858 = vdwg.mxu0
        %v1859 = vmax.f32 %v1854, 0.0
        %v1860 = vpack.c.bf16 %v1859, %v1859
        %v1861 = vld [vmem:[%s7] sm:$0xf]
        %v1862 = vld [vmem:[%s7 + $0x4] sm:$0xf]
        %v1863 = vld [vmem:[%s7 + $0x8] sm:$0xf]
        %v1864 = vld [vmem:[%s7 + $0xc] sm:$0xf]
        %v1865 = vld [vmem:[%s7 + $0x10] sm:$0xf]
        %v1866 = vld [vmem:[%s7 + $0x14] sm:$0xf]
        %v1867 = vld [vmem:[%s7 + $0x18] sm:$0xf]
        %v1868 = vld [vmem:[%s7 + $0x1c] sm:$0xf]
        %v1869 = vld [vmem:[%s8] sm:$0x1]
        %v1878 = vunpack.c.l.b16 %v1861
        %v1879 = vunpack.c.l.b16 %v1862
        %v1880 = vunpack.c.l.b16 %v1863
        %v1881 = vunpack.c.l.b16 %v1864
        %v1882 = vunpack.c.l.b16 %v1865
        %v1883 = vunpack.c.l.b16 %v1866
        %v1884 = vunpack.c.l.b16 %v1867
        %v1885 = vunpack.c.l.b16 %v1868
        %v1886 = vpack.c.b16 %v1879, %v1878
        %v1887 = vpack.c.b16 %v1881, %v1880
        %v1888 = vpack.c.b16 %v1883, %v1882
        %v1889 = vpack.c.b16 %v1885, %v1884
        %v1895 = vsel %vm467, %v1860, 0
        %1897 = vmatprep.subr.bf16.mxu0 0
        %1898 = vmatpush1.bf16.msra.mxu0 %v1886
        %1899 = vmatprep.subr.bf16.mxu0 0
        %1900 = vmatpush1.bf16.msra.mxu0 %v1887
        %1901 = vmatprep.subr.bf16.mxu0 0
        %1902 = vmatpush1.bf16.msra.mxu0 %v1888
        %1903 = vmatprep.subr.bf16.mxu0 0
        %1904 = vmatpush1.bf16.msra.mxu0 %v1889
        %1905 = vmatprep.subr.bf16.mxu0 0
        %1906 = vmatpush1.bf16.msra.mxu0 0
        %1907 = vmatprep.subr.bf16.mxu0 0
        %1908 = vmatpush1.bf16.msra.mxu0 0
        %1909 = vmatprep.subr.bf16.mxu0 0
        %1910 = vmatpush1.bf16.msra.mxu0 0
        %1911 = vmatprep.subr.bf16.mxu0 0
        %1912 = vmatpush1.bf16.msra.mxu0 0
        %1913 = vmatprep.subr.bf16.mxu0 0
        %1914 = vmatpush1.bf16.msra.mxu0 0
        %1915 = vmatprep.subr.bf16.mxu0 0
        %1916 = vmatpush1.bf16.msra.mxu0 0
        %1917 = vmatprep.subr.bf16.mxu0 0
        %1918 = vmatpush1.bf16.msra.mxu0 0
        %1919 = vmatprep.subr.bf16.mxu0 0
        %1920 = vmatpush1.bf16.msra.mxu0 0
        %1921 = vmatprep.subr.bf16.mxu0 0
        %1922 = vmatpush1.bf16.msra.mxu0 0
        %1923 = vmatprep.subr.bf16.mxu0 0
        %1924 = vmatpush1.bf16.msra.mxu0 0
        %1925 = vmatprep.subr.bf16.mxu0 0
        %1926 = vmatpush1.bf16.msra.mxu0 0
        %1927 = vmatprep.subr.bf16.mxu0 0
        %1928 = vmatpush1.bf16.msra.mxu0 0
        %1929 = vmatprep.mubr.bf16.mxu0 0
        %1930 = vmatmul.mubr.bf16.gmra.mrb[0].mxu0 %v1895
        %v1931 = vpop.f32.mrb[0].mxu0
        %v1932 = vadd.f32 %v1869, %v1931
        %v1933 = vpop.f32.mrb[0].mxu0
        %v1934 = vpop.f32.mrb[0].mxu0
        %v1935 = vpop.f32.mrb[0].mxu0
        %1936 = vdwg.mxu0
        %v1937 = vxor.u32 %v1932, 2147483648
        %v1938 = vmul.f32 %v1937, 1.442695
        %v1939 = vpow.pop %v1938
        %v1940 = vadd.f32 %v1939, 1.0
        %v1941 = vrcp.pop %v1940
        %v1942 = vmul.f32 1.0, %v1941
        %v1943 = vlaneseq
        %v1944 = vshrl.u32 %v1943, 7
        %v1945 = vsub.s32 0, %v1944
        %v1946 = vrot.slane %v1942, %v1945
        %v1947 = vmul.f32 %v1752, %v1946
        %v1948 = vmul.f32 %v1753, %v1946
        %v1949 = vmul.f32 %v1754, %v1946
        %v1950 = vmul.f32 %v1755, %v1946
        %v1951 = vmul.f32 %v1756, %v1946
        %v1952 = vmul.f32 %v1757, %v1946
        %v1953 = vmul.f32 %v1758, %v1946
        %v1954 = vmul.f32 %v1759, %v1946
        %v1955 = vpack.c.bf16 %v1948, %v1947
        %v1956 = vpack.c.bf16 %v1950, %v1949
        %v1957 = vpack.c.bf16 %v1952, %v1951
        %v1958 = vpack.c.bf16 %v1954, %v1953
        %v1959 = vld [vmem:[%s9] sm:$0xf]
        %v1960 = vld [vmem:[%s9 + $0x4] sm:$0xf]
        %v1961 = vld [vmem:[%s9 + $0x8] sm:$0xf]
        %v1962 = vld [vmem:[%s9 + $0xc] sm:$0xf]
        %v1963 = vld [vmem:[%s9 + $0x10] sm:$0xf]
        %v1964 = vld [vmem:[%s9 + $0x14] sm:$0xf]
        %v1965 = vld [vmem:[%s9 + $0x18] sm:$0xf]
        %v1966 = vld [vmem:[%s9 + $0x1c] sm:$0xf]
        %v1967 = vld [vmem:[%s10] sm:$0x1]
        %v1969 = vlaneseq
        %v1970 = vshrl.u32 %v1969, 7
        %v1971 = vsub.s32 0, %v1970
        %v1972 = vrot.slane %v1967, %v1971
        %v1982 = vunpack.c.l.b16 %v1959
        %v1983 = vunpack.c.l.b16 %v1960
        %v1984 = vunpack.c.l.b16 %v1961
        %v1985 = vunpack.c.l.b16 %v1962
        %v1986 = vunpack.c.l.b16 %v1963
        %v1987 = vunpack.c.l.b16 %v1964
        %v1988 = vunpack.c.l.b16 %v1965
        %v1989 = vunpack.c.l.b16 %v1966
        %v1990 = vpack.c.b16 %v1983, %v1982
        %v1991 = vpack.c.b16 %v1985, %v1984
        %v1992 = vpack.c.b16 %v1987, %v1986
        %v1993 = vpack.c.b16 %v1989, %v1988
        %v1999 = vsel %vm467, %v1955, 0
        %v2002 = vsel %vm467, %v1956, 0
        %v2005 = vsel %vm467, %v1957, 0
        %v2008 = vsel %vm467, %v1958, 0
        %2010 = vmatprep.subr.bf16.mxu0 0
        %2011 = vmatpush1.bf16.msra.mxu0 %v1990
        %2012 = vmatprep.subr.bf16.mxu0 0
        %2013 = vmatpush1.bf16.msra.mxu0 %v1991
        %2014 = vmatprep.subr.bf16.mxu0 0
        %2015 = vmatpush1.bf16.msra.mxu0 %v1992
        %2016 = vmatprep.subr.bf16.mxu0 0
        %2017 = vmatpush1.bf16.msra.mxu0 %v1993
        %2018 = vmatprep.subr.bf16.mxu0 0
        %2019 = vmatpush1.bf16.msra.mxu0 0
        %2020 = vmatprep.subr.bf16.mxu0 0
        %2021 = vmatpush1.bf16.msra.mxu0 0
        %2022 = vmatprep.subr.bf16.mxu0 0
        %2023 = vmatpush1.bf16.msra.mxu0 0
        %2024 = vmatprep.subr.bf16.mxu0 0
        %2025 = vmatpush1.bf16.msra.mxu0 0
        %2026 = vmatprep.subr.bf16.mxu0 0
        %2027 = vmatpush1.bf16.msra.mxu0 0
        %2028 = vmatprep.subr.bf16.mxu0 0
        %2029 = vmatpush1.bf16.msra.mxu0 0
        %2030 = vmatprep.subr.bf16.mxu0 0
        %2031 = vmatpush1.bf16.msra.mxu0 0
        %2032 = vmatprep.subr.bf16.mxu0 0
        %2033 = vmatpush1.bf16.msra.mxu0 0
        %2034 = vmatprep.subr.bf16.mxu0 0
        %2035 = vmatpush1.bf16.msra.mxu0 0
        %2036 = vmatprep.subr.bf16.mxu0 0
        %2037 = vmatpush1.bf16.msra.mxu0 0
        %2038 = vmatprep.subr.bf16.mxu0 0
        %2039 = vmatpush1.bf16.msra.mxu0 0
        %2040 = vmatprep.subr.bf16.mxu0 0
        %2041 = vmatpush1.bf16.msra.mxu0 0
        %2042 = vmatprep.mubr.bf16.mxu0 0
        %2043 = vmatmul.mubr.bf16.gmra.mrb[0].mxu0 %v1999
        %v2044 = vpop.f32.mrb[0].mxu0
        %v2045 = vadd.f32 %v1972, %v2044
        %v2046 = vpop.f32.mrb[0].mxu0
        %v2047 = vpop.f32.mrb[0].mxu0
        %v2048 = vadd.f32 %v1972, %v2047
        %v2049 = vpop.f32.mrb[0].mxu0
        %2050 = vmatprep.mubr.bf16.mxu0 0
        %2051 = vmatmul.mubr.bf16.gmra.mrb[0].mxu0 %v2002
        %v2052 = vpop.f32.mrb[0].mxu0
        %v2053 = vadd.f32 %v1972, %v2052
        %v2054 = vpop.f32.mrb[0].mxu0
        %v2055 = vpop.f32.mrb[0].mxu0
        %v2056 = vadd.f32 %v1972, %v2055
        %v2057 = vpop.f32.mrb[0].mxu0
        %2058 = vmatprep.mubr.bf16.mxu0 0
        %2059 = vmatmul.mubr.bf16.gmra.mrb[0].mxu0 %v2005
        %v2060 = vpop.f32.mrb[0].mxu0
        %v2061 = vadd.f32 %v1972, %v2060
        %v2062 = vpop.f32.mrb[0].mxu0
        %v2063 = vpop.f32.mrb[0].mxu0
        %v2064 = vadd.f32 %v1972, %v2063
        %v2065 = vpop.f32.mrb[0].mxu0
        %2066 = vmatprep.mubr.bf16.mxu0 0
        %2067 = vmatmul.mubr.bf16.gmra.mrb[0].mxu0 %v2008
        %v2068 = vpop.f32.mrb[0].mxu0
        %v2069 = vadd.f32 %v1972, %v2068
        %v2070 = vpop.f32.mrb[0].mxu0
        %v2071 = vpop.f32.mrb[0].mxu0
        %v2072 = vadd.f32 %v1972, %v2071
        %v2073 = vpop.f32.mrb[0].mxu0
        %2074 = vdwg.mxu0
        %v2075 = vld [vmem:[%s11] sm:$0x1]
        %v2076 = vld [vmem:[%s12] sm:$0x1]
        %v2077 = vsel %vm467, %v2045, 0.0
        %2078 = vadd.xlane.f32.xlu0 %v2077
        %v2079 = vpop.xlane.xlu0 %2078
        %v2080 = vsel %vm467, %v2048, 0.0
        %2081 = vadd.xlane.f32.xlu0 %v2080
        %v2082 = vpop.xlane.xlu0 %2081
        %v2083 = vsel %vm467, %v2053, 0.0
        %2084 = vadd.xlane.f32.xlu0 %v2083
        %v2085 = vpop.xlane.xlu0 %2084
        %v2086 = vsel %vm467, %v2056, 0.0
        %2087 = vadd.xlane.f32.xlu0 %v2086
        %v2088 = vpop.xlane.xlu0 %2087
        %v2089 = vsel %vm467, %v2061, 0.0
        %2090 = vadd.xlane.f32.xlu0 %v2089
        %v2091 = vpop.xlane.xlu0 %2090
        %v2092 = vsel %vm467, %v2064, 0.0
        %2093 = vadd.xlane.f32.xlu0 %v2092
        %v2094 = vpop.xlane.xlu0 %2093
        %v2095 = vsel %vm467, %v2069, 0.0
        %2096 = vadd.xlane.f32.xlu0 %v2095
        %v2097 = vpop.xlane.xlu0 %2096
        %v2098 = vsel %vm467, %v2072, 0.0
        %2099 = vadd.xlane.f32.xlu0 %v2098
        %v2100 = vpop.xlane.xlu0 %2099
        %v2101 = vmul.f32 %v2079, %v1579
        %v2102 = vmul.f32 %v2082, %v1579
        %v2103 = vmul.f32 %v2085, %v1579
        %v2104 = vmul.f32 %v2088, %v1579
        %v2105 = vmul.f32 %v2091, %v1579
        %v2106 = vmul.f32 %v2094, %v1579
        %v2107 = vmul.f32 %v2097, %v1579
        %v2108 = vmul.f32 %v2100, %v1579
        %v2109 = vsub.f32 %v2045, %v2101
        %v2110 = vsub.f32 %v2048, %v2102
        %v2111 = vsub.f32 %v2053, %v2103
        %v2112 = vsub.f32 %v2056, %v2104
        %v2113 = vsub.f32 %v2061, %v2105
        %v2114 = vsub.f32 %v2064, %v2106
        %v2115 = vsub.f32 %v2069, %v2107
        %v2116 = vsub.f32 %v2072, %v2108
        %v2117 = vmul.f32 %v2109, %v2109
        %v2118 = vmul.f32 %v2110, %v2110
        %v2119 = vmul.f32 %v2111, %v2111
        %v2120 = vmul.f32 %v2112, %v2112
        %v2121 = vmul.f32 %v2113, %v2113
        %v2122 = vmul.f32 %v2114, %v2114
        %v2123 = vmul.f32 %v2115, %v2115
        %v2124 = vmul.f32 %v2116, %v2116
        %v2125 = vsel %vm467, %v2117, 0.0
        %2126 = vadd.xlane.f32.xlu0 %v2125
        %v2127 = vpop.xlane.xlu0 %2126
        %v2128 = vsel %vm467, %v2118, 0.0
        %2129 = vadd.xlane.f32.xlu0 %v2128
        %v2130 = vpop.xlane.xlu0 %2129
        %v2131 = vsel %vm467, %v2119, 0.0
        %2132 = vadd.xlane.f32.xlu0 %v2131
        %v2133 = vpop.xlane.xlu0 %2132
        %v2134 = vsel %vm467, %v2120, 0.0
        %2135 = vadd.xlane.f32.xlu0 %v2134
        %v2136 = vpop.xlane.xlu0 %2135
        %v2137 = vsel %vm467, %v2121, 0.0
        %2138 = vadd.xlane.f32.xlu0 %v2137
        %v2139 = vpop.xlane.xlu0 %2138
        %v2140 = vsel %vm467, %v2122, 0.0
        %2141 = vadd.xlane.f32.xlu0 %v2140
        %v2142 = vpop.xlane.xlu0 %2141
        %v2143 = vsel %vm467, %v2123, 0.0
        %2144 = vadd.xlane.f32.xlu0 %v2143
        %v2145 = vpop.xlane.xlu0 %2144
        %v2146 = vsel %vm467, %v2124, 0.0
        %2147 = vadd.xlane.f32.xlu0 %v2146
        %v2148 = vpop.xlane.xlu0 %2147
        %v2149 = vmul.f32 %v2127, %v1579
        %v2150 = vmul.f32 %v2130, %v1579
        %v2151 = vmul.f32 %v2133, %v1579
        %v2152 = vmul.f32 %v2136, %v1579
        %v2153 = vmul.f32 %v2139, %v1579
        %v2154 = vmul.f32 %v2142, %v1579
        %v2155 = vmul.f32 %v2145, %v1579
        %v2156 = vmul.f32 %v2148, %v1579
        %v2157 = vadd.f32 %v2149, 1e-06
        %v2158 = vadd.f32 %v2150, 1e-06
        %v2159 = vadd.f32 %v2151, 1e-06
        %v2160 = vadd.f32 %v2152, 1e-06
        %v2161 = vadd.f32 %v2153, 1e-06
        %v2162 = vadd.f32 %v2154, 1e-06
        %v2163 = vadd.f32 %v2155, 1e-06
        %v2164 = vadd.f32 %v2156, 1e-06
        %v2165 = vrsqrt.pop %v2157
        %v2166 = vrsqrt.pop %v2158
        %v2167 = vrsqrt.pop %v2159
        %v2168 = vrsqrt.pop %v2160
        %v2169 = vrsqrt.pop %v2161
        %v2170 = vrsqrt.pop %v2162
        %v2171 = vrsqrt.pop %v2163
        %v2172 = vrsqrt.pop %v2164
        %v2173 = vmul.f32 %v2109, %v2165
        %v2174 = vmul.f32 %v2110, %v2166
        %v2175 = vmul.f32 %v2111, %v2167
        %v2176 = vmul.f32 %v2112, %v2168
        %v2177 = vmul.f32 %v2113, %v2169
        %v2178 = vmul.f32 %v2114, %v2170
        %v2179 = vmul.f32 %v2115, %v2171
        %v2180 = vmul.f32 %v2116, %v2172
        %v2182 = vlaneseq
        %v2183 = vshrl.u32 %v2182, 7
        %v2184 = vsub.s32 0, %v2183
        %v2185 = vrot.slane %v2075, %v2184
        %v2187 = vmul.f32 %v2173, %v2185
        %v2188 = vmul.f32 %v2174, %v2185
        %v2189 = vmul.f32 %v2175, %v2185
        %v2190 = vmul.f32 %v2176, %v2185
        %v2191 = vmul.f32 %v2177, %v2185
        %v2192 = vmul.f32 %v2178, %v2185
        %v2193 = vmul.f32 %v2179, %v2185
        %v2194 = vmul.f32 %v2180, %v2185
        %v2196 = vlaneseq
        %v2197 = vshrl.u32 %v2196, 7
        %v2198 = vsub.s32 0, %v2197
        %v2199 = vrot.slane %v2076, %v2198
        %v2201 = vadd.f32 %v2187, %v2199
        %v2202 = vadd.f32 %v2188, %v2199
        %v2203 = vadd.f32 %v2189, %v2199
        %v2204 = vadd.f32 %v2190, %v2199
        %v2205 = vadd.f32 %v2191, %v2199
        %v2206 = vadd.f32 %v2192, %v2199
        %v2207 = vadd.f32 %v2193, %v2199
        %v2208 = vadd.f32 %v2194, %v2199
        %v2209 = vmul.f32 %v2201, %v2201
        %v2210 = vmul.f32 %v2202, %v2202
        %v2211 = vmul.f32 %v2203, %v2203
        %v2212 = vmul.f32 %v2204, %v2204
        %v2213 = vmul.f32 %v2205, %v2205
        %v2214 = vmul.f32 %v2206, %v2206
        %v2215 = vmul.f32 %v2207, %v2207
        %v2216 = vmul.f32 %v2208, %v2208
        %v2217 = vmul.f32 %v2201, %v2209
        %v2218 = vmul.f32 %v2202, %v2210
        %v2219 = vmul.f32 %v2203, %v2211
        %v2220 = vmul.f32 %v2204, %v2212
        %v2221 = vmul.f32 %v2205, %v2213
        %v2222 = vmul.f32 %v2206, %v2214
        %v2223 = vmul.f32 %v2207, %v2215
        %v2224 = vmul.f32 %v2208, %v2216
        %v2225 = vmul.f32 %v2217, 0.044715
        %v2226 = vmul.f32 %v2218, 0.044715
        %v2227 = vmul.f32 %v2219, 0.044715
        %v2228 = vmul.f32 %v2220, 0.044715
        %v2229 = vmul.f32 %v2221, 0.044715
        %v2230 = vmul.f32 %v2222, 0.044715
        %v2231 = vmul.f32 %v2223, 0.044715
        %v2232 = vmul.f32 %v2224, 0.044715
        %v2233 = vadd.f32 %v2201, %v2225
        %v2234 = vadd.f32 %v2202, %v2226
        %v2235 = vadd.f32 %v2203, %v2227
        %v2236 = vadd.f32 %v2204, %v2228
        %v2237 = vadd.f32 %v2205, %v2229
        %v2238 = vadd.f32 %v2206, %v2230
        %v2239 = vadd.f32 %v2207, %v2231
        %v2240 = vadd.f32 %v2208, %v2232
        %v2241 = vmul.f32 %v2233, 0.7978846
        %v2242 = vmul.f32 %v2234, 0.7978846
        %v2243 = vmul.f32 %v2235, 0.7978846
        %v2244 = vmul.f32 %v2236, 0.7978846
        %v2245 = vmul.f32 %v2237, 0.7978846
        %v2246 = vmul.f32 %v2238, 0.7978846
        %v2247 = vmul.f32 %v2239, 0.7978846
        %v2248 = vmul.f32 %v2240, 0.7978846
        %v2249 = vtanh.pop %v2241
        %v2250 = vtanh.pop %v2242
        %v2251 = vtanh.pop %v2243
        %v2252 = vtanh.pop %v2244
        %v2253 = vtanh.pop %v2245
        %v2254 = vtanh.pop %v2246
        %v2255 = vtanh.pop %v2247
        %v2256 = vtanh.pop %v2248
        %v2257 = vadd.f32 %v2249, 1.0
        %v2258 = vadd.f32 %v2250, 1.0
        %v2259 = vadd.f32 %v2251, 1.0
        %v2260 = vadd.f32 %v2252, 1.0
        %v2261 = vadd.f32 %v2253, 1.0
        %v2262 = vadd.f32 %v2254, 1.0
        %v2263 = vadd.f32 %v2255, 1.0
        %v2264 = vadd.f32 %v2256, 1.0
        %v2265 = vmul.f32 %v2257, 0.5
        %v2266 = vmul.f32 %v2258, 0.5
        %v2267 = vmul.f32 %v2259, 0.5
        %v2268 = vmul.f32 %v2260, 0.5
        %v2269 = vmul.f32 %v2261, 0.5
        %v2270 = vmul.f32 %v2262, 0.5
        %v2271 = vmul.f32 %v2263, 0.5
        %v2272 = vmul.f32 %v2264, 0.5
        %v2273 = vmul.f32 %v2201, %v2265
        %v2274 = vmul.f32 %v2202, %v2266
        %v2275 = vmul.f32 %v2203, %v2267
        %v2276 = vmul.f32 %v2204, %v2268
        %v2277 = vmul.f32 %v2205, %v2269
        %v2278 = vmul.f32 %v2206, %v2270
        %v2279 = vmul.f32 %v2207, %v2271
        %v2280 = vmul.f32 %v2208, %v2272
        %v2281 = vld [vmem:[%s13] sm:$0x1]
        %v2283 = vlaneseq
        %v2284 = vshrl.u32 %v2283, 7
        %v2285 = vsub.s32 0, %v2284
        %v2286 = vrot.slane %v2281, %v2285
        %v2288 = vmul.f32 %v2286, %v2273
        %v2289 = vmul.f32 %v2286, %v2274
        %v2290 = vmul.f32 %v2286, %v2275
        %v2291 = vmul.f32 %v2286, %v2276
        %v2292 = vmul.f32 %v2286, %v2277
        %v2293 = vmul.f32 %v2286, %v2278
        %v2294 = vmul.f32 %v2286, %v2279
        %v2295 = vmul.f32 %v2286, %v2280
        %v2296 = vadd.f32 %v943, %v2288
        %v2297 = vadd.f32 %v944, %v2289
        %v2298 = vadd.f32 %v945, %v2290
        %v2299 = vadd.f32 %v946, %v2291
        %v2300 = vadd.f32 %v947, %v2292
        %v2301 = vadd.f32 %v948, %v2293
        %v2302 = vadd.f32 %v949, %v2294
        %v2303 = vadd.f32 %v950, %v2295
        %2304 = vst.msk [vmem:[%s460] sm:$0xff] %vm467, %v2296
        %2305 = vst.msk [vmem:[%s460 + $0x8] sm:$0xff] %vm467, %v2297
        %2306 = vst.msk [vmem:[%s460 + $0x10] sm:$0xff] %vm467, %v2298
        %2307 = vst.msk [vmem:[%s460 + $0x18] sm:$0xff] %vm467, %v2299
        %2308 = vst.msk [vmem:[%s460 + $0x20] sm:$0xff] %vm467, %v2300
        %2309 = vst.msk [vmem:[%s460 + $0x28] sm:$0xff] %vm467, %v2301
        %2310 = vst.msk [vmem:[%s460 + $0x30] sm:$0xff] %vm467, %v2302
        %2311 = vst.msk [vmem:[%s460 + $0x38] sm:$0xff] %vm467, %v2303
        %s2312 = sand.u32 %s335, 1
        %s2313 = scalar_lea.sflag [#allocation5], %s2312
        %s2314 = sand.u32 %s335, 1
        %s2315 = smul.addr %s2314, 64
        %s2316 = scalar_lea.vmem [#allocation4], %s2315
        // Predicated region
        $region77: #{tpu_custom_call.1} parent=75 // pred_check
          %p2317 = pneg %p345
        $region78: #{tpu_custom_call.1} parent=75 // pred_check_branch
          %2319 = sbr.rel (%p2317) target = $region80
        $region79: #{tpu_custom_call.1} parent=75 // pred_region
          %s2321 = ssub.s32 1024, 1024
          %2322 = vsyncadd %s2313, %s2321
          %s2323 = smul.addr %s28, 8
          %s2324 = smul.addr %s2323, 128
          %s2325 = scalar_lea.hbm %s14, %s2324
          %s2326 = sshll.u32 %s2316, 4
          %s2327 = int_to_ptr.vmem [resolvable:$true] %s2326
          %2332 = dma.vmem_to_hbm [thread:$0]  %s2327, 1024, %s2325, %s2313, 128, 128, 8
        $region80: #{tpu_custom_call.1} parent=75 // pred_fallthru
          _
      $region76: #{tpu_custom_call.1} parent=5 // pred_fallthru
        _
      %p2333 = scmp.le.s32.totalorder 2, %s23
      // Predicated region
      $region81: #{tpu_custom_call.1} parent=5 // pred_check
        %p2334 = pneg %p2333
      $region82: #{tpu_custom_call.1} parent=5 // pred_check_branch
        %2336 = sbr.rel (%p2334) target = $region84
      $region83: #{tpu_custom_call.1} parent=5 // pred_region
        %s2337 = ssub.s32 %s23, 2
        // Predicated region
        $region85: #{tpu_custom_call.1} parent=83 // pred_check
          %p2338 = pneg %p351
        $region86: #{tpu_custom_call.1} parent=83 // pred_check_branch
          %2340 = sbr.rel (%p2338) target = $region88
        $region87: #{tpu_custom_call.1} parent=83 // pred_region
          %s2341 = sand.u32 %s336, 1
          %s2342 = scalar_lea.sflag [#allocation5], %s2341
          %s2343 = sand.u32 %s336, 1
          %s2344 = smul.addr %s2343, 64
          %s2345 = scalar_lea.vmem [#allocation4], %s2344
          %2346 = dma.done %s2342, 1024
        $region88: #{tpu_custom_call.1} parent=83 // pred_fallthru
          _
      $region84: #{tpu_custom_call.1} parent=5 // pred_fallthru
        _
    $region6: #{tpu_custom_call.1} parent=1 // loop_footer
      %s27 = sadd.s32 1, %s23
    $region7: #{tpu_custom_call.1} parent=1 // loop_footer_branch
      %22 = sbr.rel target = $region3
    $region8: #{tpu_custom_call.1} parent=1 // loop_exit
      _
    %2347 = vsyncpa [#allocation5], 1
    %s2348 = scalar_lea.sflag [#allocation5], 1
    %2349 = vsyncpa %s2348, 1

</llo_original>
